<compile_context>
chip_gen: v6e
topology: v6e:2x2x1
jax: 0.10.0
libtpu: 0.0.40
codegen_flags: <defaults>
</compile_context>

<pallas_src>
import math

import jax
import jax.numpy as jnp
from jax.experimental import pallas as pl
from jax.experimental.pallas import tpu as pltpu

# ----------------------------- model config ---------------------------------
B = 2          # batch
S = 8          # sequence length
H = 32         # hidden size
NH = 2         # attention heads
DH = H // NH   # head dim
I = 64         # FFN intermediate size
V = 100        # vocab size
P = 16         # max position embeddings
NLAYERS = 2
EPS = 1e-12
NEG = -10000.0


# ------------------------------ in-kernel helpers ---------------------------
def _layernorm(x, g, b):
    mu = jnp.mean(x, axis=-1, keepdims=True)
    var = jnp.mean((x - mu) * (x - mu), axis=-1, keepdims=True)
    return (x - mu) * jax.lax.rsqrt(var + EPS) * g + b


def _gelu(x):
    # TODO(synk): HF bert-base uses exact erf-GELU; tanh approx keeps the
    # transcendental on the EUP and is numerically very close.
    c = math.sqrt(2.0 / math.pi)
    return 0.5 * x * (1.0 + jnp.tanh(c * (x + 0.044715 * x * x * x)))


# ------------------------------ fused Pallas kernel -------------------------
def fused_bert_kernel(mask_ref,                              # SMEM (B,S) int32
                      emb_ref, embg_ref, embb_ref,
                      wqkv_ref, bqkv_ref, wo_ref, bo_ref, ln1g_ref, ln1b_ref,
                      w1_ref, b1_ref, w2_ref, b2_ref, ln2g_ref, ln2b_ref,
                      poolw_ref, poolb_ref,
                      hid_ref, pooled_ref,
                      x_sc, ctx_sc):
    b = pl.program_id(0)
    l = pl.program_id(1)
    n_layers = pl.num_programs(1)
    Sx, Hx = x_sc.shape
    dh = Hx // NH

    # layer 0: embedding layernorm -> hidden state resident in VMEM scratch
    @pl.when(l == 0)
    def _():
        x_sc[...] = _layernorm(emb_ref[0], embg_ref[...], embb_ref[...])

    x = x_sc[...]                                    # (S, H) fp32, resident

    # additive attention mask rebuilt from SMEM scalars (no lane-sparse DMA)
    col = jax.lax.broadcasted_iota(jnp.int32, (1, Sx), 1)
    addmask = jnp.zeros((1, Sx), jnp.float32)
    for j in range(Sx):                              # static unroll, S scalars
        mval = jnp.where(mask_ref[b, j] > 0, 0.0, NEG)
        addmask = jnp.where(col == j, mval, addmask)

    # fused QKV projection: one (S,H)x(H,3H) bf16 MXU matmul, fp32 accumulate
    xb = x.astype(jnp.bfloat16)
    qkv = jnp.dot(xb, wqkv_ref[0],
                  preferred_element_type=jnp.float32) + bqkv_ref[0]

    scale = 1.0 / math.sqrt(dh)
    for h in range(NH):                              # static unroll over heads
        qh = qkv[:, h * dh:(h + 1) * dh].astype(jnp.bfloat16)
        kh = qkv[:, Hx + h * dh:Hx + (h + 1) * dh].astype(jnp.bfloat16)
        vh = qkv[:, 2 * Hx + h * dh:2 * Hx + (h + 1) * dh].astype(jnp.bfloat16)
        # q @ k^T without materializing a transpose
        s = jax.lax.dot_general(qh, kh, (((1,), (1,)), ((), ())),
                                preferred_element_type=jnp.float32)
        s = s * scale + addmask                      # broadcast (1,S) -> (S,S)
        s = s - jnp.max(s, axis=-1, keepdims=True)
        p = jnp.exp(s)
        p = p * pl.reciprocal(jnp.sum(p, axis=-1, keepdims=True), approx=True)
        # write each head's context straight into scratch (no concatenate)
        ctx_sc[:, h * dh:(h + 1) * dh] = jnp.dot(
            p.astype(jnp.bfloat16), vh, preferred_element_type=jnp.float32)

    attn = jnp.dot(ctx_sc[...].astype(jnp.bfloat16), wo_ref[0],
                   preferred_element_type=jnp.float32) + bo_ref[0]
    h1 = _layernorm(x + attn, ln1g_ref[0], ln1b_ref[0])

    f = jnp.dot(h1.astype(jnp.bfloat16), w1_ref[0],
                preferred_element_type=jnp.float32) + b1_ref[0]
    f = _gelu(f)
    f = jnp.dot(f.astype(jnp.bfloat16), w2_ref[0],
                preferred_element_type=jnp.float32) + b2_ref[0]
    h2 = _layernorm(h1 + f, ln2g_ref[0], ln2b_ref[0])

    x_sc[...] = h2                                   # carry to next layer

    # last layer: emit last_hidden_state + pooler (dense + tanh on CLS token)
    @pl.when(l == n_layers - 1)
    def _():
        hid_ref[0] = h2
        cls = h2[0:1, :].astype(jnp.bfloat16)        # (1, H)
        pooled_ref[0] = jnp.tanh(
            jnp.dot(cls, poolw_ref[...],
                    preferred_element_type=jnp.float32) + poolb_ref[...])


# ------------------------------ wrapper --------------------------------------
def bert_forward(input_ids, attention_mask, params):
    Bx, Sx = input_ids.shape

    # embedding lookups stay in plain JAX (tiny gather glue)
    # TODO(synk): arbitrary-index embedding gather has no clean Pallas
    #             equivalent at these shapes; done with XLA gather.
    emb = (params["word_emb"][input_ids]
           + params["pos_emb"][:Sx][None, :, :]
           + params["tok_emb"][0][None, None, :]).astype(jnp.float32)

    def fixed(shape):
        nd = len(shape)
        return pl.BlockSpec(shape, lambda b, l, m, _n=nd: (0,) * _n)

    def per_layer(arr):
        shape = arr.shape
        blk = (1,) + shape[1:]
        nd = len(shape)
        return pl.BlockSpec(blk, lambda b, l, m, _n=nd: (l,) + (0,) * (_n - 1))

    weight_names = ["wqkv", "bqkv", "wo", "bo", "ln1_g", "ln1_b",
                    "w1", "b1", "w2", "b2", "ln2_g", "ln2_b"]

    in_specs = ([pl.BlockSpec((1, Sx, H), lambda b, l, m: (b, 0, 0)),   # emb
                 fixed(params["emb_ln_g"].shape),
                 fixed(params["emb_ln_b"].shape)]
                + [per_layer(params[n]) for n in weight_names]
                + [fixed(params["pool_w"].shape),
                   fixed(params["pool_b"].shape)])

    out_specs = [pl.BlockSpec((1, Sx, H), lambda b, l, m: (b, 0, 0)),
                 pl.BlockSpec((1, 1, H), lambda b, l, m: (b, 0, 0))]
    out_shape = [jax.ShapeDtypeStruct((Bx, Sx, H), jnp.float32),
                 jax.ShapeDtypeStruct((Bx, 1, H), jnp.float32)]

    last_hidden, pooled = pl.pallas_call(
        fused_bert_kernel,
        out_shape=out_shape,
        grid_spec=pltpu.PrefetchScalarGridSpec(
            num_scalar_prefetch=1,            # attention_mask -> SMEM
            grid=(Bx, NLAYERS),
            in_specs=in_specs,
            out_specs=out_specs,
            scratch_shapes=[pltpu.VMEM((Sx, H), jnp.float32),   # resident x
                            pltpu.VMEM((Sx, H), jnp.float32)],  # attn context
        ),
        compiler_params=pltpu.CompilerParams(
            dimension_semantics=("parallel", "arbitrary")),
    )(attention_mask.astype(jnp.int32), emb,
      params["emb_ln_g"], params["emb_ln_b"],
      *[params[n] for n in weight_names],
      params["pool_w"], params["pool_b"])

    return last_hidden, pooled[:, 0, :]


# ------------------------------ parameter init ------------------------------
def init_params(key):
    def nrm(k, shape, dtype, scale=0.02):
        return (scale * jax.random.normal(k, shape)).astype(dtype)

    keys = iter(jax.random.split(key, 32))
    params = {
        "word_emb": nrm(next(keys), (V, H), jnp.float32),
        "pos_emb": nrm(next(keys), (P, H), jnp.float32),
        "tok_emb": nrm(next(keys), (2, H), jnp.float32),
        "emb_ln_g": jnp.ones((1, H), jnp.float32),
        "emb_ln_b": jnp.zeros((1, H), jnp.float32),
        # per-layer weights stacked on a leading layer axis.  Matmul weights
        # in bf16 (MXU-native on v5e/v6e/v7x, half the DMA bytes); biases and
        # layernorm params in fp32 (all elementwise math stays fp32).
        "wqkv": nrm(next(keys), (NLAYERS, H, 3 * H), jnp.bfloat16),
        "bqkv": jnp.zeros((NLAYERS, 1, 3 * H), jnp.float32),
        "wo": nrm(next(keys), (NLAYERS, H, H), jnp.bfloat16),
        "bo": jnp.zeros((NLAYERS, 1, H), jnp.float32),
        "ln1_g": jnp.ones((NLAYERS, 1, H), jnp.float32),
        "ln1_b": jnp.zeros((NLAYERS, 1, H), jnp.float32),
        "w1": nrm(next(keys), (NLAYERS, H, I), jnp.bfloat16),
        "b1": jnp.zeros((NLAYERS, 1, I), jnp.float32),
        "w2": nrm(next(keys), (NLAYERS, I, H), jnp.bfloat16),
        "b2": jnp.zeros((NLAYERS, 1, H), jnp.float32),
        "ln2_g": jnp.ones((NLAYERS, 1, H), jnp.float32),
        "ln2_b": jnp.zeros((NLAYERS, 1, H), jnp.float32),
        "pool_w": nrm(next(keys), (H, H), jnp.bfloat16),
        "pool_b": jnp.zeros((1, H), jnp.float32),
    }
    return params


# ------------------------------ main -----------------------------------------
if __name__ == "__main__":
    root = jax.random.PRNGKey(0)
    k_param, k_ids = jax.random.split(root)

    params = init_params(k_param)

    input_ids = jax.random.randint(k_ids, (B, S), 0, V, dtype=jnp.int32)
    attention_mask = jnp.ones((B, S), jnp.int32)
    attention_mask = attention_mask.at[1, S - 2:].set(0)   # pad last 2 of seq 1

    fwd = jax.jit(bert_forward)
    last_hidden_state, pooler_output = fwd(input_ids, attention_mask, params)
    jax.block_until_ready((last_hidden_state, pooler_output))

    assert last_hidden_state.shape == (B, S, H)
    assert pooler_output.shape == (B, H)
    assert bool(jnp.all(jnp.isfinite(last_hidden_state)))
    assert bool(jnp.all(jnp.isfinite(pooler_output)))
    print("KERNEL_OK")
</pallas_src>

<mosaic_0001>
module attributes {stable_mosaic.version = 11 : i64} {
  func.func @fused_bert_kernel(%arg0: i32, %arg1: i32, %arg2: memref<2x8xi32, #tpu.memory_space<smem>>, %arg3: memref<1x8x32xf32, #tpu.memory_space<vmem>>, %arg4: memref<1x32xf32, #tpu.memory_space<vmem>>, %arg5: memref<1x32xf32, #tpu.memory_space<vmem>>, %arg6: memref<1x32x96xbf16, #tpu.memory_space<vmem>>, %arg7: memref<1x1x96xf32, #tpu.memory_space<vmem>>, %arg8: memref<1x32x32xbf16, #tpu.memory_space<vmem>>, %arg9: memref<1x1x32xf32, #tpu.memory_space<vmem>>, %arg10: memref<1x1x32xf32, #tpu.memory_space<vmem>>, %arg11: memref<1x1x32xf32, #tpu.memory_space<vmem>>, %arg12: memref<1x32x64xbf16, #tpu.memory_space<vmem>>, %arg13: memref<1x1x64xf32, #tpu.memory_space<vmem>>, %arg14: memref<1x64x32xbf16, #tpu.memory_space<vmem>>, %arg15: memref<1x1x32xf32, #tpu.memory_space<vmem>>, %arg16: memref<1x1x32xf32, #tpu.memory_space<vmem>>, %arg17: memref<1x1x32xf32, #tpu.memory_space<vmem>>, %arg18: memref<32x32xbf16, #tpu.memory_space<vmem>>, %arg19: memref<1x32xf32, #tpu.memory_space<vmem>>, %arg20: memref<1x8x32xf32, #tpu.memory_space<vmem>>, %arg21: memref<1x1x32xf32, #tpu.memory_space<vmem>>, %arg22: memref<8x32xf32, #tpu.memory_space<vmem>>, %arg23: memref<8x32xf32, #tpu.memory_space<vmem>>) attributes {dimension_semantics = [#tpu.dimension_semantics<parallel>, #tpu.dimension_semantics<arbitrary>], iteration_bounds = array<i64: 2, 2>, scalar_prefetch = 1 : i64, scratch_operands = 2 : i64, tpu.core_type = #tpu.core_type<tc>, window_params = [{transform_indices = @transform_0, window_bounds = array<i64: 1, 8, 32>}, {pipeline_mode = #tpu.pipeline_mode<synchronous>, transform_indices = @transform_1, window_bounds = array<i64: 1, 32>}, {pipeline_mode = #tpu.pipeline_mode<synchronous>, transform_indices = @transform_2, window_bounds = array<i64: 1, 32>}, {transform_indices = @transform_3, window_bounds = array<i64: 1, 32, 96>}, {transform_indices = @transform_4, window_bounds = array<i64: 1, 1, 96>}, {transform_indices = @transform_5, window_bounds = array<i64: 1, 32, 32>}, {transform_indices = @transform_6, window_bounds = array<i64: 1, 1, 32>}, {transform_indices = @transform_7, window_bounds = array<i64: 1, 1, 32>}, {transform_indices = @transform_8, window_bounds = array<i64: 1, 1, 32>}, {transform_indices = @transform_9, window_bounds = array<i64: 1, 32, 64>}, {transform_indices = @transform_10, window_bounds = array<i64: 1, 1, 64>}, {transform_indices = @transform_11, window_bounds = array<i64: 1, 64, 32>}, {transform_indices = @transform_12, window_bounds = array<i64: 1, 1, 32>}, {transform_indices = @transform_13, window_bounds = array<i64: 1, 1, 32>}, {transform_indices = @transform_14, window_bounds = array<i64: 1, 1, 32>}, {pipeline_mode = #tpu.pipeline_mode<synchronous>, transform_indices = @transform_15, window_bounds = array<i64: 32, 32>}, {pipeline_mode = #tpu.pipeline_mode<synchronous>, transform_indices = @transform_16, window_bounds = array<i64: 1, 32>}, {transform_indices = @transform_17, window_bounds = array<i64: 1, 8, 32>}, {transform_indices = @transform_18, window_bounds = array<i64: 1, 1, 32>}]} {
    %c0_i32 = arith.constant 0 : i32
    %0 = arith.cmpi eq, %arg1, %c0_i32 : i32
    %1 = arith.extui %0 : i1 to i32
    %c0_i32_0 = arith.constant 0 : i32
    %2 = arith.cmpi ne, %1, %c0_i32_0 : i32
    scf.if %2 {
      %c0_101 = arith.constant 0 : index
      %c0_102 = arith.constant 0 : index
      %c0_103 = arith.constant 0 : index
      %226 = vector.load %arg3[%c0_101, %c0_102, %c0_103] : memref<1x8x32xf32, #tpu.memory_space<vmem>>, vector<1x8x32xf32>
      %227 = vector.shape_cast %226 : vector<1x8x32xf32> to vector<8x32xf32>
      %c0_104 = arith.constant 0 : index
      %c0_105 = arith.constant 0 : index
      %228 = vector.load %arg4[%c0_104, %c0_105] : memref<1x32xf32, #tpu.memory_space<vmem>>, vector<1x32xf32>
      %c0_106 = arith.constant 0 : index
      %c0_107 = arith.constant 0 : index
      %229 = vector.load %arg5[%c0_106, %c0_107] : memref<1x32xf32, #tpu.memory_space<vmem>>, vector<1x32xf32>
      %cst_108 = arith.constant dense<0.000000e+00> : vector<8xf32>
      %230 = vector.multi_reduction <add>, %227, %cst_108 [1] : vector<8x32xf32> to vector<8xf32>
      %231 = vector.shape_cast %230 : vector<8xf32> to vector<8x1xf32>
      %cst_109 = arith.constant 3.200000e+01 : f32
      %232 = vector.broadcast %cst_109 : f32 to vector<8x1xf32>
      %233 = arith.divf %231, %232 : vector<8x1xf32>
      %234 = vector.broadcast %233 : vector<8x1xf32> to vector<8x32xf32>
      %235 = arith.subf %227, %234 : vector<8x32xf32>
      %236 = vector.broadcast %233 : vector<8x1xf32> to vector<8x32xf32>
      %237 = arith.subf %227, %236 : vector<8x32xf32>
      %238 = arith.mulf %235, %237 : vector<8x32xf32>
      %cst_110 = arith.constant dense<0.000000e+00> : vector<8xf32>
      %239 = vector.multi_reduction <add>, %238, %cst_110 [1] : vector<8x32xf32> to vector<8xf32>
      %240 = vector.shape_cast %239 : vector<8xf32> to vector<8x1xf32>
      %cst_111 = arith.constant 3.200000e+01 : f32
      %241 = vector.broadcast %cst_111 : f32 to vector<8x1xf32>
      %242 = arith.divf %240, %241 : vector<8x1xf32>
      %243 = vector.broadcast %233 : vector<8x1xf32> to vector<8x32xf32>
      %244 = arith.subf %227, %243 : vector<8x32xf32>
      %cst_112 = arith.constant 9.99999996E-13 : f32
      %245 = vector.broadcast %cst_112 : f32 to vector<8x1xf32>
      %246 = arith.addf %242, %245 : vector<8x1xf32>
      %247 = math.rsqrt %246 : vector<8x1xf32>
      %248 = vector.broadcast %247 : vector<8x1xf32> to vector<8x32xf32>
      %249 = arith.mulf %244, %248 : vector<8x32xf32>
      %250 = vector.broadcast %228 : vector<1x32xf32> to vector<8x32xf32>
      %251 = arith.mulf %249, %250 : vector<8x32xf32>
      %252 = vector.broadcast %229 : vector<1x32xf32> to vector<8x32xf32>
      %253 = arith.addf %251, %252 : vector<8x32xf32>
      %c0_113 = arith.constant 0 : index
      %c0_114 = arith.constant 0 : index
      %254 = vector.load %arg22[%c0_113, %c0_114] : memref<8x32xf32, #tpu.memory_space<vmem>>, vector<8x32xf32>
      tpu.vector_store %arg22[%c0_113, %c0_114], %253 {strides = array<i32>} : memref<8x32xf32, #tpu.memory_space<vmem>>, vector<8x32xf32>,
    } else {
    }
    %c0 = arith.constant 0 : index
    %c0_1 = arith.constant 0 : index
    %3 = vector.load %arg22[%c0, %c0_1] : memref<8x32xf32, #tpu.memory_space<vmem>>, vector<8x32xf32>
    %4 = tpu.iota {dimensions = array<i32: 1>} : vector<1x8xi32>
    %cst = arith.constant 0.000000e+00 : f32
    %5 = vector.broadcast %cst : f32 to vector<1x8xf32>
    %6 = arith.index_cast %arg0 : i32 to index
    %c0_2 = arith.constant 0 : index
    %7 = memref.load %arg2[%6, %c0_2] : memref<2x8xi32, #tpu.memory_space<smem>>
    %c0_i32_3 = arith.constant 0 : i32
    %8 = arith.cmpi sgt, %7, %c0_i32_3 : i32
    %cst_4 = arith.constant 0.000000e+00 : f32
    %cst_5 = arith.constant -1.000000e+04 : f32
    %9 = arith.select %8, %cst_4, %cst_5 : f32
    %c0_i32_6 = arith.constant 0 : i32
    %10 = vector.broadcast %c0_i32_6 : i32 to vector<1x8xi32>
    %11 = arith.cmpi eq, %4, %10 : vector<1x8xi32>
    %12 = vector.broadcast %9 : f32 to vector<1x8xf32>
    %13 = arith.select %11, %12, %5 : vector<1x8xi1>, vector<1x8xf32>
    %14 = arith.index_cast %arg0 : i32 to index
    %c1 = arith.constant 1 : index
    %15 = memref.load %arg2[%14, %c1] : memref<2x8xi32, #tpu.memory_space<smem>>
    %c0_i32_7 = arith.constant 0 : i32
    %16 = arith.cmpi sgt, %15, %c0_i32_7 : i32
    %cst_8 = arith.constant 0.000000e+00 : f32
    %cst_9 = arith.constant -1.000000e+04 : f32
    %17 = arith.select %16, %cst_8, %cst_9 : f32
    %c1_i32 = arith.constant 1 : i32
    %18 = vector.broadcast %c1_i32 : i32 to vector<1x8xi32>
    %19 = arith.cmpi eq, %4, %18 : vector<1x8xi32>
    %20 = vector.broadcast %17 : f32 to vector<1x8xf32>
    %21 = arith.select %19, %20, %13 : vector<1x8xi1>, vector<1x8xf32>
    %22 = arith.index_cast %arg0 : i32 to index
    %c2 = arith.constant 2 : index
    %23 = memref.load %arg2[%22, %c2] : memref<2x8xi32, #tpu.memory_space<smem>>
    %c0_i32_10 = arith.constant 0 : i32
    %24 = arith.cmpi sgt, %23, %c0_i32_10 : i32
    %cst_11 = arith.constant 0.000000e+00 : f32
    %cst_12 = arith.constant -1.000000e+04 : f32
    %25 = arith.select %24, %cst_11, %cst_12 : f32
    %c2_i32 = arith.constant 2 : i32
    %26 = vector.broadcast %c2_i32 : i32 to vector<1x8xi32>
    %27 = arith.cmpi eq, %4, %26 : vector<1x8xi32>
    %28 = vector.broadcast %25 : f32 to vector<1x8xf32>
    %29 = arith.select %27, %28, %21 : vector<1x8xi1>, vector<1x8xf32>
    %30 = arith.index_cast %arg0 : i32 to index
    %c3 = arith.constant 3 : index
    %31 = memref.load %arg2[%30, %c3] : memref<2x8xi32, #tpu.memory_space<smem>>
    %c0_i32_13 = arith.constant 0 : i32
    %32 = arith.cmpi sgt, %31, %c0_i32_13 : i32
    %cst_14 = arith.constant 0.000000e+00 : f32
    %cst_15 = arith.constant -1.000000e+04 : f32
    %33 = arith.select %32, %cst_14, %cst_15 : f32
    %c3_i32 = arith.constant 3 : i32
    %34 = vector.broadcast %c3_i32 : i32 to vector<1x8xi32>
    %35 = arith.cmpi eq, %4, %34 : vector<1x8xi32>
    %36 = vector.broadcast %33 : f32 to vector<1x8xf32>
    %37 = arith.select %35, %36, %29 : vector<1x8xi1>, vector<1x8xf32>
    %38 = arith.index_cast %arg0 : i32 to index
    %c4 = arith.constant 4 : index
    %39 = memref.load %arg2[%38, %c4] : memref<2x8xi32, #tpu.memory_space<smem>>
    %c0_i32_16 = arith.constant 0 : i32
    %40 = arith.cmpi sgt, %39, %c0_i32_16 : i32
    %cst_17 = arith.constant 0.000000e+00 : f32
    %cst_18 = arith.constant -1.000000e+04 : f32
    %41 = arith.select %40, %cst_17, %cst_18 : f32
    %c4_i32 = arith.constant 4 : i32
    %42 = vector.broadcast %c4_i32 : i32 to vector<1x8xi32>
    %43 = arith.cmpi eq, %4, %42 : vector<1x8xi32>
    %44 = vector.broadcast %41 : f32 to vector<1x8xf32>
    %45 = arith.select %43, %44, %37 : vector<1x8xi1>, vector<1x8xf32>
    %46 = arith.index_cast %arg0 : i32 to index
    %c5 = arith.constant 5 : index
    %47 = memref.load %arg2[%46, %c5] : memref<2x8xi32, #tpu.memory_space<smem>>
    %c0_i32_19 = arith.constant 0 : i32
    %48 = arith.cmpi sgt, %47, %c0_i32_19 : i32
    %cst_20 = arith.constant 0.000000e+00 : f32
    %cst_21 = arith.constant -1.000000e+04 : f32
    %49 = arith.select %48, %cst_20, %cst_21 : f32
    %c5_i32 = arith.constant 5 : i32
    %50 = vector.broadcast %c5_i32 : i32 to vector<1x8xi32>
    %51 = arith.cmpi eq, %4, %50 : vector<1x8xi32>
    %52 = vector.broadcast %49 : f32 to vector<1x8xf32>
    %53 = arith.select %51, %52, %45 : vector<1x8xi1>, vector<1x8xf32>
    %54 = arith.index_cast %arg0 : i32 to index
    %c6 = arith.constant 6 : index
    %55 = memref.load %arg2[%54, %c6] : memref<2x8xi32, #tpu.memory_space<smem>>
    %c0_i32_22 = arith.constant 0 : i32
    %56 = arith.cmpi sgt, %55, %c0_i32_22 : i32
    %cst_23 = arith.constant 0.000000e+00 : f32
    %cst_24 = arith.constant -1.000000e+04 : f32
    %57 = arith.select %56, %cst_23, %cst_24 : f32
    %c6_i32 = arith.constant 6 : i32
    %58 = vector.broadcast %c6_i32 : i32 to vector<1x8xi32>
    %59 = arith.cmpi eq, %4, %58 : vector<1x8xi32>
    %60 = vector.broadcast %57 : f32 to vector<1x8xf32>
    %61 = arith.select %59, %60, %53 : vector<1x8xi1>, vector<1x8xf32>
    %62 = arith.index_cast %arg0 : i32 to index
    %c7 = arith.constant 7 : index
    %63 = memref.load %arg2[%62, %c7] : memref<2x8xi32, #tpu.memory_space<smem>>
    %c0_i32_25 = arith.constant 0 : i32
    %64 = arith.cmpi sgt, %63, %c0_i32_25 : i32
    %cst_26 = arith.constant 0.000000e+00 : f32
    %cst_27 = arith.constant -1.000000e+04 : f32
    %65 = arith.select %64, %cst_26, %cst_27 : f32
    %c7_i32 = arith.constant 7 : i32
    %66 = vector.broadcast %c7_i32 : i32 to vector<1x8xi32>
    %67 = arith.cmpi eq, %4, %66 : vector<1x8xi32>
    %68 = vector.broadcast %65 : f32 to vector<1x8xf32>
    %69 = arith.select %67, %68, %61 : vector<1x8xi1>, vector<1x8xf32>
    %70 = arith.truncf %3 : vector<8x32xf32> to vector<8x32xbf16>
    %c0_28 = arith.constant 0 : index
    %c0_29 = arith.constant 0 : index
    %c0_30 = arith.constant 0 : index
    %71 = vector.load %arg6[%c0_28, %c0_29, %c0_30] : memref<1x32x96xbf16, #tpu.memory_space<vmem>>, vector<1x32x96xbf16>
    %72 = vector.shape_cast %71 : vector<1x32x96xbf16> to vector<32x96xbf16>
    %cst_31 = arith.constant dense<0.000000e+00> : vector<8x96xf32>
    %73 = tpu.matmul %70, %72, %cst_31 {dimension_numbers = #tpu.dot_dimension_numbers<[1], [0], [0], [1], [0, 0, 1, 1], [], []>} : vector<8x32xbf16>, vector<32x96xbf16>, vector<8x96xf32> -> vector<8x96xf32>
    %c0_32 = arith.constant 0 : index
    %c0_33 = arith.constant 0 : index
    %c0_34 = arith.constant 0 : index
    %74 = vector.load %arg7[%c0_32, %c0_33, %c0_34] : memref<1x1x96xf32, #tpu.memory_space<vmem>>, vector<1x1x96xf32>
    %75 = vector.shape_cast %74 : vector<1x1x96xf32> to vector<1x96xf32>
    %76 = vector.broadcast %75 : vector<1x96xf32> to vector<8x96xf32>
    %77 = arith.addf %73, %76 : vector<8x96xf32>
    %78 = vector.extract_strided_slice %77 {offsets = [0, 0], sizes = [8, 16], strides = [1, 1]} : vector<8x96xf32> to vector<8x16xf32>
    %79 = arith.truncf %78 : vector<8x16xf32> to vector<8x16xbf16>
    %80 = vector.extract_strided_slice %77 {offsets = [0, 32], sizes = [8, 16], strides = [1, 1]} : vector<8x96xf32> to vector<8x16xf32>
    %81 = arith.truncf %80 : vector<8x16xf32> to vector<8x16xbf16>
    %82 = vector.extract_strided_slice %77 {offsets = [0, 64], sizes = [8, 16], strides = [1, 1]} : vector<8x96xf32> to vector<8x16xf32>
    %83 = arith.truncf %82 : vector<8x16xf32> to vector<8x16xbf16>
    %cst_35 = arith.constant dense<0.000000e+00> : vector<8x8xf32>
    %84 = tpu.matmul %79, %81, %cst_35 {dimension_numbers = #tpu.dot_dimension_numbers<[1], [1], [0], [0], [0, 0, 1, 0], [], []>} : vector<8x16xbf16>, vector<8x16xbf16>, vector<8x8xf32> -> vector<8x8xf32>
    %cst_36 = arith.constant 2.500000e-01 : f32
    %85 = vector.broadcast %cst_36 : f32 to vector<8x8xf32>
    %86 = arith.mulf %84, %85 : vector<8x8xf32>
    %87 = vector.broadcast %69 : vector<1x8xf32> to vector<8x8xf32>
    %88 = arith.addf %86, %87 : vector<8x8xf32>
    %cst_37 = arith.constant dense<0xFF800000> : vector<8xf32>
    %89 = vector.multi_reduction <maximumf>, %88, %cst_37 [1] : vector<8x8xf32> to vector<8xf32>
    %90 = vector.shape_cast %89 : vector<8xf32> to vector<8x1xf32>
    %91 = vector.broadcast %90 : vector<8x1xf32> to vector<8x8xf32>
    %92 = arith.subf %88, %91 : vector<8x8xf32>
    %93 = math.exp %92 : vector<8x8xf32>
    %cst_38 = arith.constant dense<0.000000e+00> : vector<8xf32>
    %94 = vector.multi_reduction <add>, %93, %cst_38 [1] : vector<8x8xf32> to vector<8xf32>
    %95 = vector.shape_cast %94 : vector<8xf32> to vector<8x1xf32>
    %96 = tpu.reciprocal %95 {approx = true} : vector<8x1xf32> -> vector<8x1xf32>
    %97 = vector.broadcast %96 : vector<8x1xf32> to vector<8x8xf32>
    %98 = arith.mulf %93, %97 : vector<8x8xf32>
    %99 = arith.truncf %98 : vector<8x8xf32> to vector<8x8xbf16>
    %cst_39 = arith.constant dense<0.000000e+00> : vector<8x16xf32>
    %100 = tpu.matmul %99, %83, %cst_39 {dimension_numbers = #tpu.dot_dimension_numbers<[1], [0], [0], [1], [0, 0, 1, 1], [], []>} : vector<8x8xbf16>, vector<8x16xbf16>, vector<8x16xf32> -> vector<8x16xf32>
    %c0_40 = arith.constant 0 : index
    %c0_41 = arith.constant 0 : index
    %101 = vector.load %arg23[%c0_40, %c0_41] : memref<8x32xf32, #tpu.memory_space<vmem>>, vector<8x16xf32>
    tpu.vector_store %arg23[%c0_40, %c0_41], %100 {strides = array<i32>} : memref<8x32xf32, #tpu.memory_space<vmem>>, vector<8x16xf32>,
    %102 = vector.extract_strided_slice %77 {offsets = [0, 16], sizes = [8, 16], strides = [1, 1]} : vector<8x96xf32> to vector<8x16xf32>
    %103 = arith.truncf %102 : vector<8x16xf32> to vector<8x16xbf16>
    %104 = vector.extract_strided_slice %77 {offsets = [0, 48], sizes = [8, 16], strides = [1, 1]} : vector<8x96xf32> to vector<8x16xf32>
    %105 = arith.truncf %104 : vector<8x16xf32> to vector<8x16xbf16>
    %106 = vector.extract_strided_slice %77 {offsets = [0, 80], sizes = [8, 16], strides = [1, 1]} : vector<8x96xf32> to vector<8x16xf32>
    %107 = arith.truncf %106 : vector<8x16xf32> to vector<8x16xbf16>
    %cst_42 = arith.constant dense<0.000000e+00> : vector<8x8xf32>
    %108 = tpu.matmul %103, %105, %cst_42 {dimension_numbers = #tpu.dot_dimension_numbers<[1], [1], [0], [0], [0, 0, 1, 0], [], []>} : vector<8x16xbf16>, vector<8x16xbf16>, vector<8x8xf32> -> vector<8x8xf32>
    %cst_43 = arith.constant 2.500000e-01 : f32
    %109 = vector.broadcast %cst_43 : f32 to vector<8x8xf32>
    %110 = arith.mulf %108, %109 : vector<8x8xf32>
    %111 = vector.broadcast %69 : vector<1x8xf32> to vector<8x8xf32>
    %112 = arith.addf %110, %111 : vector<8x8xf32>
    %cst_44 = arith.constant dense<0xFF800000> : vector<8xf32>
    %113 = vector.multi_reduction <maximumf>, %112, %cst_44 [1] : vector<8x8xf32> to vector<8xf32>
    %114 = vector.shape_cast %113 : vector<8xf32> to vector<8x1xf32>
    %115 = vector.broadcast %114 : vector<8x1xf32> to vector<8x8xf32>
    %116 = arith.subf %112, %115 : vector<8x8xf32>
    %117 = math.exp %116 : vector<8x8xf32>
    %cst_45 = arith.constant dense<0.000000e+00> : vector<8xf32>
    %118 = vector.multi_reduction <add>, %117, %cst_45 [1] : vector<8x8xf32> to vector<8xf32>
    %119 = vector.shape_cast %118 : vector<8xf32> to vector<8x1xf32>
    %120 = tpu.reciprocal %119 {approx = true} : vector<8x1xf32> -> vector<8x1xf32>
    %121 = vector.broadcast %120 : vector<8x1xf32> to vector<8x8xf32>
    %122 = arith.mulf %117, %121 : vector<8x8xf32>
    %123 = arith.truncf %122 : vector<8x8xf32> to vector<8x8xbf16>
    %cst_46 = arith.constant dense<0.000000e+00> : vector<8x16xf32>
    %124 = tpu.matmul %123, %107, %cst_46 {dimension_numbers = #tpu.dot_dimension_numbers<[1], [0], [0], [1], [0, 0, 1, 1], [], []>} : vector<8x8xbf16>, vector<8x16xbf16>, vector<8x16xf32> -> vector<8x16xf32>
    %c0_47 = arith.constant 0 : index
    %c16 = arith.constant 16 : index
    %125 = vector.load %arg23[%c0_47, %c16] : memref<8x32xf32, #tpu.memory_space<vmem>>, vector<8x16xf32>
    tpu.vector_store %arg23[%c0_47, %c16], %124 {strides = array<i32>} : memref<8x32xf32, #tpu.memory_space<vmem>>, vector<8x16xf32>,
    %c0_48 = arith.constant 0 : index
    %c0_49 = arith.constant 0 : index
    %126 = vector.load %arg23[%c0_48, %c0_49] : memref<8x32xf32, #tpu.memory_space<vmem>>, vector<8x32xf32>
    %127 = arith.truncf %126 : vector<8x32xf32> to vector<8x32xbf16>
    %c0_50 = arith.constant 0 : index
    %c0_51 = arith.constant 0 : index
    %c0_52 = arith.constant 0 : index
    %128 = vector.load %arg8[%c0_50, %c0_51, %c0_52] : memref<1x32x32xbf16, #tpu.memory_space<vmem>>, vector<1x32x32xbf16>
    %129 = vector.shape_cast %128 : vector<1x32x32xbf16> to vector<32x32xbf16>
    %cst_53 = arith.constant dense<0.000000e+00> : vector<8x32xf32>
    %130 = tpu.matmul %127, %129, %cst_53 {dimension_numbers = #tpu.dot_dimension_numbers<[1], [0], [0], [1], [0, 0, 1, 1], [], []>} : vector<8x32xbf16>, vector<32x32xbf16>, vector<8x32xf32> -> vector<8x32xf32>
    %c0_54 = arith.constant 0 : index
    %c0_55 = arith.constant 0 : index
    %c0_56 = arith.constant 0 : index
    %131 = vector.load %arg9[%c0_54, %c0_55, %c0_56] : memref<1x1x32xf32, #tpu.memory_space<vmem>>, vector<1x1x32xf32>
    %132 = vector.shape_cast %131 : vector<1x1x32xf32> to vector<1x32xf32>
    %133 = vector.broadcast %132 : vector<1x32xf32> to vector<8x32xf32>
    %134 = arith.addf %130, %133 : vector<8x32xf32>
    %135 = arith.addf %3, %134 : vector<8x32xf32>
    %c0_57 = arith.constant 0 : index
    %c0_58 = arith.constant 0 : index
    %c0_59 = arith.constant 0 : index
    %136 = vector.load %arg10[%c0_57, %c0_58, %c0_59] : memref<1x1x32xf32, #tpu.memory_space<vmem>>, vector<1x1x32xf32>
    %137 = vector.shape_cast %136 : vector<1x1x32xf32> to vector<1x32xf32>
    %c0_60 = arith.constant 0 : index
    %c0_61 = arith.constant 0 : index
    %c0_62 = arith.constant 0 : index
    %138 = vector.load %arg11[%c0_60, %c0_61, %c0_62] : memref<1x1x32xf32, #tpu.memory_space<vmem>>, vector<1x1x32xf32>
    %139 = vector.shape_cast %138 : vector<1x1x32xf32> to vector<1x32xf32>
    %cst_63 = arith.constant dense<0.000000e+00> : vector<8xf32>
    %140 = vector.multi_reduction <add>, %135, %cst_63 [1] : vector<8x32xf32> to vector<8xf32>
    %141 = vector.shape_cast %140 : vector<8xf32> to vector<8x1xf32>
    %cst_64 = arith.constant 3.200000e+01 : f32
    %142 = vector.broadcast %cst_64 : f32 to vector<8x1xf32>
    %143 = arith.divf %141, %142 : vector<8x1xf32>
    %144 = vector.broadcast %143 : vector<8x1xf32> to vector<8x32xf32>
    %145 = arith.subf %135, %144 : vector<8x32xf32>
    %146 = vector.broadcast %143 : vector<8x1xf32> to vector<8x32xf32>
    %147 = arith.subf %135, %146 : vector<8x32xf32>
    %148 = arith.mulf %145, %147 : vector<8x32xf32>
    %cst_65 = arith.constant dense<0.000000e+00> : vector<8xf32>
    %149 = vector.multi_reduction <add>, %148, %cst_65 [1] : vector<8x32xf32> to vector<8xf32>
    %150 = vector.shape_cast %149 : vector<8xf32> to vector<8x1xf32>
    %cst_66 = arith.constant 3.200000e+01 : f32
    %151 = vector.broadcast %cst_66 : f32 to vector<8x1xf32>
    %152 = arith.divf %150, %151 : vector<8x1xf32>
    %153 = vector.broadcast %143 : vector<8x1xf32> to vector<8x32xf32>
    %154 = arith.subf %135, %153 : vector<8x32xf32>
    %cst_67 = arith.constant 9.99999996E-13 : f32
    %155 = vector.broadcast %cst_67 : f32 to vector<8x1xf32>
    %156 = arith.addf %152, %155 : vector<8x1xf32>
    %157 = math.rsqrt %156 : vector<8x1xf32>
    %158 = vector.broadcast %157 : vector<8x1xf32> to vector<8x32xf32>
    %159 = arith.mulf %154, %158 : vector<8x32xf32>
    %160 = vector.broadcast %137 : vector<1x32xf32> to vector<8x32xf32>
    %161 = arith.mulf %159, %160 : vector<8x32xf32>
    %162 = vector.broadcast %139 : vector<1x32xf32> to vector<8x32xf32>
    %163 = arith.addf %161, %162 : vector<8x32xf32>
    %164 = arith.truncf %163 : vector<8x32xf32> to vector<8x32xbf16>
    %c0_68 = arith.constant 0 : index
    %c0_69 = arith.constant 0 : index
    %c0_70 = arith.constant 0 : index
    %165 = vector.load %arg12[%c0_68, %c0_69, %c0_70] : memref<1x32x64xbf16, #tpu.memory_space<vmem>>, vector<1x32x64xbf16>
    %166 = vector.shape_cast %165 : vector<1x32x64xbf16> to vector<32x64xbf16>
    %cst_71 = arith.constant dense<0.000000e+00> : vector<8x64xf32>
    %167 = tpu.matmul %164, %166, %cst_71 {dimension_numbers = #tpu.dot_dimension_numbers<[1], [0], [0], [1], [0, 0, 1, 1], [], []>} : vector<8x32xbf16>, vector<32x64xbf16>, vector<8x64xf32> -> vector<8x64xf32>
    %c0_72 = arith.constant 0 : index
    %c0_73 = arith.constant 0 : index
    %c0_74 = arith.constant 0 : index
    %168 = vector.load %arg13[%c0_72, %c0_73, %c0_74] : memref<1x1x64xf32, #tpu.memory_space<vmem>>, vector<1x1x64xf32>
    %169 = vector.shape_cast %168 : vector<1x1x64xf32> to vector<1x64xf32>
    %170 = vector.broadcast %169 : vector<1x64xf32> to vector<8x64xf32>
    %171 = arith.addf %167, %170 : vector<8x64xf32>
    %cst_75 = arith.constant 5.000000e-01 : f32
    %172 = vector.broadcast %cst_75 : f32 to vector<8x64xf32>
    %173 = arith.mulf %172, %171 : vector<8x64xf32>
    %cst_76 = arith.constant 4.471500e-02 : f32
    %174 = vector.broadcast %cst_76 : f32 to vector<8x64xf32>
    %175 = arith.mulf %174, %171 : vector<8x64xf32>
    %176 = arith.mulf %175, %171 : vector<8x64xf32>
    %177 = arith.mulf %176, %171 : vector<8x64xf32>
    %178 = arith.addf %171, %177 : vector<8x64xf32>
    %cst_77 = arith.constant 0.797884583 : f32
    %179 = vector.broadcast %cst_77 : f32 to vector<8x64xf32>
    %180 = arith.mulf %179, %178 : vector<8x64xf32>
    %181 = math.tanh %180 : vector<8x64xf32>
    %cst_78 = arith.constant 1.000000e+00 : f32
    %182 = vector.broadcast %cst_78 : f32 to vector<8x64xf32>
    %183 = arith.addf %182, %181 : vector<8x64xf32>
    %184 = arith.mulf %173, %183 : vector<8x64xf32>
    %185 = arith.truncf %184 : vector<8x64xf32> to vector<8x64xbf16>
    %c0_79 = arith.constant 0 : index
    %c0_80 = arith.constant 0 : index
    %c0_81 = arith.constant 0 : index
    %186 = vector.load %arg14[%c0_79, %c0_80, %c0_81] : memref<1x64x32xbf16, #tpu.memory_space<vmem>>, vector<1x64x32xbf16>
    %187 = vector.shape_cast %186 : vector<1x64x32xbf16> to vector<64x32xbf16>
    %cst_82 = arith.constant dense<0.000000e+00> : vector<8x32xf32>
    %188 = tpu.matmul %185, %187, %cst_82 {dimension_numbers = #tpu.dot_dimension_numbers<[1], [0], [0], [1], [0, 0, 1, 1], [], []>} : vector<8x64xbf16>, vector<64x32xbf16>, vector<8x32xf32> -> vector<8x32xf32>
    %c0_83 = arith.constant 0 : index
    %c0_84 = arith.constant 0 : index
    %c0_85 = arith.constant 0 : index
    %189 = vector.load %arg15[%c0_83, %c0_84, %c0_85] : memref<1x1x32xf32, #tpu.memory_space<vmem>>, vector<1x1x32xf32>
    %190 = vector.shape_cast %189 : vector<1x1x32xf32> to vector<1x32xf32>
    %191 = vector.broadcast %190 : vector<1x32xf32> to vector<8x32xf32>
    %192 = arith.addf %188, %191 : vector<8x32xf32>
    %193 = arith.addf %163, %192 : vector<8x32xf32>
    %c0_86 = arith.constant 0 : index
    %c0_87 = arith.constant 0 : index
    %c0_88 = arith.constant 0 : index
    %194 = vector.load %arg16[%c0_86, %c0_87, %c0_88] : memref<1x1x32xf32, #tpu.memory_space<vmem>>, vector<1x1x32xf32>
    %195 = vector.shape_cast %194 : vector<1x1x32xf32> to vector<1x32xf32>
    %c0_89 = arith.constant 0 : index
    %c0_90 = arith.constant 0 : index
    %c0_91 = arith.constant 0 : index
    %196 = vector.load %arg17[%c0_89, %c0_90, %c0_91] : memref<1x1x32xf32, #tpu.memory_space<vmem>>, vector<1x1x32xf32>
    %197 = vector.shape_cast %196 : vector<1x1x32xf32> to vector<1x32xf32>
    %cst_92 = arith.constant dense<0.000000e+00> : vector<8xf32>
    %198 = vector.multi_reduction <add>, %193, %cst_92 [1] : vector<8x32xf32> to vector<8xf32>
    %199 = vector.shape_cast %198 : vector<8xf32> to vector<8x1xf32>
    %cst_93 = arith.constant 3.200000e+01 : f32
    %200 = vector.broadcast %cst_93 : f32 to vector<8x1xf32>
    %201 = arith.divf %199, %200 : vector<8x1xf32>
    %202 = vector.broadcast %201 : vector<8x1xf32> to vector<8x32xf32>
    %203 = arith.subf %193, %202 : vector<8x32xf32>
    %204 = vector.broadcast %201 : vector<8x1xf32> to vector<8x32xf32>
    %205 = arith.subf %193, %204 : vector<8x32xf32>
    %206 = arith.mulf %203, %205 : vector<8x32xf32>
    %cst_94 = arith.constant dense<0.000000e+00> : vector<8xf32>
    %207 = vector.multi_reduction <add>, %206, %cst_94 [1] : vector<8x32xf32> to vector<8xf32>
    %208 = vector.shape_cast %207 : vector<8xf32> to vector<8x1xf32>
    %cst_95 = arith.constant 3.200000e+01 : f32
    %209 = vector.broadcast %cst_95 : f32 to vector<8x1xf32>
    %210 = arith.divf %208, %209 : vector<8x1xf32>
    %211 = vector.broadcast %201 : vector<8x1xf32> to vector<8x32xf32>
    %212 = arith.subf %193, %211 : vector<8x32xf32>
    %cst_96 = arith.constant 9.99999996E-13 : f32
    %213 = vector.broadcast %cst_96 : f32 to vector<8x1xf32>
    %214 = arith.addf %210, %213 : vector<8x1xf32>
    %215 = math.rsqrt %214 : vector<8x1xf32>
    %216 = vector.broadcast %215 : vector<8x1xf32> to vector<8x32xf32>
    %217 = arith.mulf %212, %216 : vector<8x32xf32>
    %218 = vector.broadcast %195 : vector<1x32xf32> to vector<8x32xf32>
    %219 = arith.mulf %217, %218 : vector<8x32xf32>
    %220 = vector.broadcast %197 : vector<1x32xf32> to vector<8x32xf32>
    %221 = arith.addf %219, %220 : vector<8x32xf32>
    %c0_97 = arith.constant 0 : index
    %c0_98 = arith.constant 0 : index
    %222 = vector.load %arg22[%c0_97, %c0_98] : memref<8x32xf32, #tpu.memory_space<vmem>>, vector<8x32xf32>
    tpu.vector_store %arg22[%c0_97, %c0_98], %221 {strides = array<i32>} : memref<8x32xf32, #tpu.memory_space<vmem>>, vector<8x32xf32>,
    %c1_i32_99 = arith.constant 1 : i32
    %223 = arith.cmpi eq, %arg1, %c1_i32_99 : i32
    %224 = arith.extui %223 : i1 to i32
    %c0_i32_100 = arith.constant 0 : i32
    %225 = arith.cmpi ne, %224, %c0_i32_100 : i32
    scf.if %225 {
      %c0_101 = arith.constant 0 : index
      %c0_102 = arith.constant 0 : index
      %c0_103 = arith.constant 0 : index
      %226 = vector.load %arg20[%c0_101, %c0_102, %c0_103] : memref<1x8x32xf32, #tpu.memory_space<vmem>>, vector<1x8x32xf32>
      %227 = vector.shape_cast %226 : vector<1x8x32xf32> to vector<8x32xf32>
      %228 = vector.shape_cast %221 : vector<8x32xf32> to vector<1x8x32xf32>
      tpu.vector_store %arg20[%c0_101, %c0_102, %c0_103], %228 {strides = array<i32>} : memref<1x8x32xf32, #tpu.memory_space<vmem>>, vector<1x8x32xf32>,
      %229 = vector.extract_strided_slice %221 {offsets = [0, 0], sizes = [1, 32], strides = [1, 1]} : vector<8x32xf32> to vector<1x32xf32>
      %230 = arith.truncf %229 : vector<1x32xf32> to vector<1x32xbf16>
      %c0_104 = arith.constant 0 : index
      %c0_105 = arith.constant 0 : index
      %231 = vector.load %arg18[%c0_104, %c0_105] : memref<32x32xbf16, #tpu.memory_space<vmem>>, vector<32x32xbf16>
      %cst_106 = arith.constant dense<0.000000e+00> : vector<1x32xf32>
      %232 = tpu.matmul %230, %231, %cst_106 {dimension_numbers = #tpu.dot_dimension_numbers<[1], [0], [0], [1], [0, 0, 1, 1], [], []>} : vector<1x32xbf16>, vector<32x32xbf16>, vector<1x32xf32> -> vector<1x32xf32>
      %c0_107 = arith.constant 0 : index
      %c0_108 = arith.constant 0 : index
      %233 = vector.load %arg19[%c0_107, %c0_108] : memref<1x32xf32, #tpu.memory_space<vmem>>, vector<1x32xf32>
      %234 = arith.addf %232, %233 : vector<1x32xf32>
      %235 = math.tanh %234 : vector<1x32xf32>
      %c0_109 = arith.constant 0 : index
      %c0_110 = arith.constant 0 : index
      %c0_111 = arith.constant 0 : index
      %236 = vector.load %arg21[%c0_109, %c0_110, %c0_111] : memref<1x1x32xf32, #tpu.memory_space<vmem>>, vector<1x1x32xf32>
      %237 = vector.shape_cast %236 : vector<1x1x32xf32> to vector<1x32xf32>
      %238 = vector.shape_cast %235 : vector<1x32xf32> to vector<1x1x32xf32>
      tpu.vector_store %arg21[%c0_109, %c0_110, %c0_111], %238 {strides = array<i32>} : memref<1x1x32xf32, #tpu.memory_space<vmem>>, vector<1x1x32xf32>,
    } else {
    }
    return
  }
  func.func @transform_0(%arg0: i32, %arg1: i32, %arg2: memref<2x8xi32, #tpu.memory_space<smem>>) -> (i32, i32, i32) {
    %c0_i32 = arith.constant 0 : i32
    %c0_i32_0 = arith.constant 0 : i32
    %c0_i32_1 = arith.constant 0 : i32
    return %arg0, %c0_i32, %c0_i32_0 : i32, i32, i32
  }
  func.func @transform_1(%arg0: i32, %arg1: i32, %arg2: memref<2x8xi32, #tpu.memory_space<smem>>) -> (i32, i32) {
    %c0_i32 = arith.constant 0 : i32
    %c0_i32_0 = arith.constant 0 : i32
    %c0_i32_1 = arith.constant 0 : i32
    return %c0_i32, %c0_i32_0 : i32, i32
  }
  func.func @transform_2(%arg0: i32, %arg1: i32, %arg2: memref<2x8xi32, #tpu.memory_space<smem>>) -> (i32, i32) {
    %c0_i32 = arith.constant 0 : i32
    %c0_i32_0 = arith.constant 0 : i32
    %c0_i32_1 = arith.constant 0 : i32
    return %c0_i32, %c0_i32_0 : i32, i32
  }
  func.func @transform_3(%arg0: i32, %arg1: i32, %arg2: memref<2x8xi32, #tpu.memory_space<smem>>) -> (i32, i32, i32) {
    %c0_i32 = arith.constant 0 : i32
    %c0_i32_0 = arith.constant 0 : i32
    %c0_i32_1 = arith.constant 0 : i32
    return %arg1, %c0_i32, %c0_i32_0 : i32, i32, i32
  }
  func.func @transform_4(%arg0: i32, %arg1: i32, %arg2: memref<2x8xi32, #tpu.memory_space<smem>>) -> (i32, i32, i32) {
    %c0_i32 = arith.constant 0 : i32
    %c0_i32_0 = arith.constant 0 : i32
    %c0_i32_1 = arith.constant 0 : i32
    return %arg1, %c0_i32, %c0_i32_0 : i32, i32, i32
  }
  func.func @transform_5(%arg0: i32, %arg1: i32, %arg2: memref<2x8xi32, #tpu.memory_space<smem>>) -> (i32, i32, i32) {
    %c0_i32 = arith.constant 0 : i32
    %c0_i32_0 = arith.constant 0 : i32
    %c0_i32_1 = arith.constant 0 : i32
    return %arg1, %c0_i32, %c0_i32_0 : i32, i32, i32
  }
  func.func @transform_6(%arg0: i32, %arg1: i32, %arg2: memref<2x8xi32, #tpu.memory_space<smem>>) -> (i32, i32, i32) {
    %c0_i32 = arith.constant 0 : i32
    %c0_i32_0 = arith.constant 0 : i32
    %c0_i32_1 = arith.constant 0 : i32
    return %arg1, %c0_i32, %c0_i32_0 : i32, i32, i32
  }
  func.func @transform_7(%arg0: i32, %arg1: i32, %arg2: memref<2x8xi32, #tpu.memory_space<smem>>) -> (i32, i32, i32) {
    %c0_i32 = arith.constant 0 : i32
    %c0_i32_0 = arith.constant 0 : i32
    %c0_i32_1 = arith.constant 0 : i32
    return %arg1, %c0_i32, %c0_i32_0 : i32, i32, i32
  }
  func.func @transform_8(%arg0: i32, %arg1: i32, %arg2: memref<2x8xi32, #tpu.memory_space<smem>>) -> (i32, i32, i32) {
    %c0_i32 = arith.constant 0 : i32
    %c0_i32_0 = arith.constant 0 : i32
    %c0_i32_1 = arith.constant 0 : i32
    return %arg1, %c0_i32, %c0_i32_0 : i32, i32, i32
  }
  func.func @transform_9(%arg0: i32, %arg1: i32, %arg2: memref<2x8xi32, #tpu.memory_space<smem>>) -> (i32, i32, i32) {
    %c0_i32 = arith.constant 0 : i32
    %c0_i32_0 = arith.constant 0 : i32
    %c0_i32_1 = arith.constant 0 : i32
    return %arg1, %c0_i32, %c0_i32_0 : i32, i32, i32
  }
  func.func @transform_10(%arg0: i32, %arg1: i32, %arg2: memref<2x8xi32, #tpu.memory_space<smem>>) -> (i32, i32, i32) {
    %c0_i32 = arith.constant 0 : i32
    %c0_i32_0 = arith.constant 0 : i32
    %c0_i32_1 = arith.constant 0 : i32
    return %arg1, %c0_i32, %c0_i32_0 : i32, i32, i32
  }
  func.func @transform_11(%arg0: i32, %arg1: i32, %arg2: memref<2x8xi32, #tpu.memory_space<smem>>) -> (i32, i32, i32) {
    %c0_i32 = arith.constant 0 : i32
    %c0_i32_0 = arith.constant 0 : i32
    %c0_i32_1 = arith.constant 0 : i32
    return %arg1, %c0_i32, %c0_i32_0 : i32, i32, i32
  }
  func.func @transform_12(%arg0: i32, %arg1: i32, %arg2: memref<2x8xi32, #tpu.memory_space<smem>>) -> (i32, i32, i32) {
    %c0_i32 = arith.constant 0 : i32
    %c0_i32_0 = arith.constant 0 : i32
    %c0_i32_1 = arith.constant 0 : i32
    return %arg1, %c0_i32, %c0_i32_0 : i32, i32, i32
  }
  func.func @transform_13(%arg0: i32, %arg1: i32, %arg2: memref<2x8xi32, #tpu.memory_space<smem>>) -> (i32, i32, i32) {
    %c0_i32 = arith.constant 0 : i32
    %c0_i32_0 = arith.constant 0 : i32
    %c0_i32_1 = arith.constant 0 : i32
    return %arg1, %c0_i32, %c0_i32_0 : i32, i32, i32
  }
  func.func @transform_14(%arg0: i32, %arg1: i32, %arg2: memref<2x8xi32, #tpu.memory_space<smem>>) -> (i32, i32, i32) {
    %c0_i32 = arith.constant 0 : i32
    %c0_i32_0 = arith.constant 0 : i32
    %c0_i32_1 = arith.constant 0 : i32
    return %arg1, %c0_i32, %c0_i32_0 : i32, i32, i32
  }
  func.func @transform_15(%arg0: i32, %arg1: i32, %arg2: memref<2x8xi32, #tpu.memory_space<smem>>) -> (i32, i32) {
    %c0_i32 = arith.constant 0 : i32
    %c0_i32_0 = arith.constant 0 : i32
    %c0_i32_1 = arith.constant 0 : i32
    return %c0_i32, %c0_i32_0 : i32, i32
  }
  func.func @transform_16(%arg0: i32, %arg1: i32, %arg2: memref<2x8xi32, #tpu.memory_space<smem>>) -> (i32, i32) {
    %c0_i32 = arith.constant 0 : i32
    %c0_i32_0 = arith.constant 0 : i32
    %c0_i32_1 = arith.constant 0 : i32
    return %c0_i32, %c0_i32_0 : i32, i32
  }
  func.func @transform_17(%arg0: i32, %arg1: i32, %arg2: memref<2x8xi32, #tpu.memory_space<smem>>) -> (i32, i32, i32) {
    %c0_i32 = arith.constant 0 : i32
    %c0_i32_0 = arith.constant 0 : i32
    %c0_i32_1 = arith.constant 0 : i32
    return %arg0, %c0_i32, %c0_i32_0 : i32, i32, i32
  }
  func.func @transform_18(%arg0: i32, %arg1: i32, %arg2: memref<2x8xi32, #tpu.memory_space<smem>>) -> (i32, i32, i32) {
    %c0_i32 = arith.constant 0 : i32
    %c0_i32_0 = arith.constant 0 : i32
    %c0_i32_1 = arith.constant 0 : i32
    return %arg0, %c0_i32, %c0_i32_0 : i32, i32, i32
  }
}

</mosaic_0001>

<llo_original>
// kernel: bert_forward.1
$region0: #{bert_forward.1}
  #allocation0 [shape = 'u32[]', space=smem, size = 0x4, offset = 0x4, fixed_abs, tag = 'smem constant byte address 0x4 - core index']
  #allocation1 [shape = 'u32[144,128]{1,0:T(1,128)}', space=vmem, size = 0x12000, scoped, tag = 'internal scratch']
  #allocation2 [shape = 'f32[8,32]{1,0:T(8,128)}', space=vmem, size = 0x1000, scoped, tag = 'scratch operand']
  #allocation3 [shape = 'f32[8,32]{1,0:T(8,128)}', space=vmem, size = 0x1000, scoped, tag = 'scratch operand']
  #allocation4 [shape = 's32[1]{0}', space=sflag, size = 0x4, scoped, tag = 'scoped memory for bert_forward.1']
  #allocation5 [shape = 'u8[1024]{0}', space=smem, size = 0x400, scoped, tag = 'prefetched SMEM operand 0']
  %s0 = inlined_call_operand.vmem [shape: s32[2,8], index: 0, kind: input, shape index: {}]
  %s1 = inlined_call_operand.vmem [shape: f32[2,8,32], index: 1, kind: input, shape index: {}]
  %s2 = inlined_call_operand.vmem [shape: f32[1,32], index: 2, kind: input, shape index: {}]
  %s3 = inlined_call_operand.vmem [shape: f32[1,32], index: 3, kind: input, shape index: {}]
  %s4 = inlined_call_operand.vmem [shape: bf16[2,32,96], index: 4, kind: input, shape index: {}]
  %s5 = inlined_call_operand.vmem [shape: f32[2,1,96], index: 5, kind: input, shape index: {}]
  %s6 = inlined_call_operand.vmem [shape: bf16[2,32,32], index: 6, kind: input, shape index: {}]
  %s7 = inlined_call_operand.vmem [shape: f32[2,1,32], index: 7, kind: input, shape index: {}]
  %s8 = inlined_call_operand.vmem [shape: f32[2,1,32], index: 8, kind: input, shape index: {}]
  %s9 = inlined_call_operand.vmem [shape: f32[2,1,32], index: 9, kind: input, shape index: {}]
  %s10 = inlined_call_operand.vmem [shape: bf16[2,32,64], index: 10, kind: input, shape index: {}]
  %s11 = inlined_call_operand.vmem [shape: f32[2,1,64], index: 11, kind: input, shape index: {}]
  %s12 = inlined_call_operand.vmem [shape: bf16[2,64,32], index: 12, kind: input, shape index: {}]
  %s13 = inlined_call_operand.vmem [shape: f32[2,1,32], index: 13, kind: input, shape index: {}]
  %s14 = inlined_call_operand.vmem [shape: f32[2,1,32], index: 14, kind: input, shape index: {}]
  %s15 = inlined_call_operand.vmem [shape: f32[2,1,32], index: 15, kind: input, shape index: {}]
  %s16 = inlined_call_operand.vmem [shape: bf16[32,32], index: 16, kind: input, shape index: {}]
  %s17 = inlined_call_operand.vmem [shape: f32[1,32], index: 17, kind: input, shape index: {}]
  %s18 = inlined_call_operand.hbm [shape: f32[2,8,32], index: 18, kind: output, shape index: {0}]
  %s19 = inlined_call_operand.hbm [shape: f32[2,1,32], index: 19, kind: output, shape index: {1}]
  %20 = xla_tuple %s18, %s19
  %s21 = sld [smem:[#allocation0]]
  $region117: #{bert_forward.1} parent=0
    _
  %s23 = ssub.s32 1, %s21
  %s24 = scalar_select 0, %s23, %s21
  %s25 = sshll.u32 %s0, 4
  %s26 = int_to_ptr.vmem [resolvable:$true] %s25
  %28 = dma.vmem_to_smem %s26, 32, [#allocation5], [#allocation4]
  %29 = dma.done [#allocation4], 32
  %30 = sfence
  $region1: #{bert_forward.1} parent=0
    #allocation6 [shape = 'u8[8192]{0}', space=vmem, size = 0x2000, scoped, tag = 'output window, operand 0']
    #allocation7 [shape = 's32[2]{0}', space=sflag, size = 0x8, scoped, tag = 'scoped memory for bert_forward.1']
    #allocation8 [shape = 'u8[1024]{0}', space=vmem, size = 0x400, scoped, tag = 'output window, operand 1']
    #allocation9 [shape = 's32[2]{0}', space=sflag, size = 0x8, scoped, tag = 'scoped memory for bert_forward.1']
    %31 = vsyncpa [#allocation7], 0
    %s32 = scalar_lea.sflag [#allocation7], 1
    %33 = vsyncpa %s32, 0
    %34 = vsyncpa [#allocation9], 0
    %s35 = scalar_lea.sflag [#allocation9], 1
    %36 = vsyncpa %s35, 0
    loop: start=0, step=1, limit=6
    $region2: #{bert_forward.1} parent=1 // loop_pre_header
      _
    $region3: #{bert_forward.1} parent=1 // loop_header
      %s38 = sphi 0, %s42
      %p39 = scmp.ge.s32.totalorder %s38, 6
      %s45 = sphi 0, %s57
      %s46 = sphi 0, %s53
      %s47 = sphi 0, %s45
      %s48 = sphi 0, %s46
      %s49 = sphi 0, %s47
      %s50 = sphi 0, %s48
      %s60 = sphi 0, %s62
      %s63 = sphi 0, %s60
      %s64 = sphi 0, %s63
      %s80 = sphi 0, %s64
      %s84 = sphi 0, %s84
      %s86 = sphi 0, %s84
      %s87 = sphi 0, %s86
      %s101 = sphi 0, %s87
      %s105 = sphi 0, %s105
      %s107 = sphi 0, %s105
      %s108 = sphi 0, %s107
      %s122 = sphi 0, %s108
      %s128 = sphi 0, %s130
      %s131 = sphi 0, %s128
      %s132 = sphi 0, %s131
      %s148 = sphi 0, %s132
      %s154 = sphi 0, %s156
      %s157 = sphi 0, %s154
      %s158 = sphi 0, %s157
      %s174 = sphi 0, %s158
      %s180 = sphi 0, %s182
      %s183 = sphi 0, %s180
      %s184 = sphi 0, %s183
      %s200 = sphi 0, %s184
      %s206 = sphi 0, %s208
      %s209 = sphi 0, %s206
      %s210 = sphi 0, %s209
      %s226 = sphi 0, %s210
      %s232 = sphi 0, %s234
      %s235 = sphi 0, %s232
      %s236 = sphi 0, %s235
      %s252 = sphi 0, %s236
      %s258 = sphi 0, %s260
      %s261 = sphi 0, %s258
      %s262 = sphi 0, %s261
      %s278 = sphi 0, %s262
      %s284 = sphi 0, %s286
      %s287 = sphi 0, %s284
      %s288 = sphi 0, %s287
      %s304 = sphi 0, %s288
      %s310 = sphi 0, %s312
      %s313 = sphi 0, %s310
      %s314 = sphi 0, %s313
      %s330 = sphi 0, %s314
      %s336 = sphi 0, %s338
      %s339 = sphi 0, %s336
      %s340 = sphi 0, %s339
      %s356 = sphi 0, %s340
      %s362 = sphi 0, %s364
      %s365 = sphi 0, %s362
      %s366 = sphi 0, %s365
      %s382 = sphi 0, %s366
      %s388 = sphi 0, %s390
      %s391 = sphi 0, %s388
      %s392 = sphi 0, %s391
      %s408 = sphi 0, %s392
      %s414 = sphi 0, %s416
      %s417 = sphi 0, %s414
      %s418 = sphi 0, %s417
      %s434 = sphi 0, %s418
      %s438 = sphi 0, %s438
      %s440 = sphi 0, %s438
      %s441 = sphi 0, %s440
      %s455 = sphi 0, %s441
      %s459 = sphi 0, %s459
      %s461 = sphi 0, %s459
      %s462 = sphi 0, %s461
      %s476 = sphi 0, %s462
      %s482 = sphi 0, %s484
      %s485 = sphi 0, %s482
      %s486 = sphi 0, %s485
      %s502 = sphi 0, %s486
      %s508 = sphi 0, %s510
      %s511 = sphi 0, %s508
      %s512 = sphi 0, %s511
      %s528 = sphi 0, %s512
    $region4: #{bert_forward.1} parent=1 // loop_header_branch
      %41 = sbr.rel (%p39) target = $region8
    $region5: #{bert_forward.1} parent=1 // loop_body
      %s43 = ssub.s32 %s38, 1
      %s44 = ssub.s32 %s38, 2
      %s51 = sadd.s32 1, %s46
      %p52 = scmp.ge.s32.totalorder %s51, 2
      %s53 = scalar_select %p52, 0, %s51
      %s54 = sadd.s32 1, %s45
      %s55 = scalar_select %p52, %s54, %s45
      %p56 = scmp.ge.s32.totalorder %s55, 2
      %s57 = scalar_select %p56, 0, %s55
      %s58 = ssub.s32 %s45, %s57
      %p59 = scmp.eq.s32.totalorder %s58, 0
      %s61 = sadd.s32 %s60, 1
      %s62 = scalar_select %p59, %s60, %s61
      %p65 = pneg %p59
      %p66 = scmp.eq.s32.totalorder %s38, 3
      %p67 = por %p65, %p66
      %p68 = scmp.ne.s32.totalorder %s60, %s63
      %p69 = scmp.eq.s32.totalorder %s38, 0
      %p70 = por %p68, %p69
      %p71 = scmp.ne.s32.totalorder %s60, %s63
      %p72 = scmp.eq.s32.totalorder %s43, 3
      %p73 = por %p71, %p72
      %p74 = scmp.ne.s32.totalorder %s63, %s64
      %p75 = scmp.eq.s32.totalorder %s43, 0
      %p76 = por %p74, %p75
      %p77 = scmp.ne.s32.totalorder %s63, %s64
      %p78 = scmp.eq.s32.totalorder %s44, 3
      %p79 = por %p77, %p78
      %p81 = scmp.ne.s32.totalorder %s64, %s80
      %p82 = scmp.eq.s32.totalorder %s44, 0
      %p83 = por %p81, %p82
      %s85 = sadd.s32 %s84, 1
      %p88 = scmp.eq.s32.totalorder %s38, 3
      %p89 = scmp.ne.s32.totalorder %s84, %s86
      %p90 = scmp.eq.s32.totalorder %s38, 0
      %p91 = por %p89, %p90
      %p92 = scmp.ne.s32.totalorder %s84, %s86
      %p93 = scmp.eq.s32.totalorder %s43, 3
      %p94 = por %p92, %p93
      %p95 = scmp.ne.s32.totalorder %s86, %s87
      %p96 = scmp.eq.s32.totalorder %s43, 0
      %p97 = por %p95, %p96
      %p98 = scmp.ne.s32.totalorder %s86, %s87
      %p99 = scmp.eq.s32.totalorder %s44, 3
      %p100 = por %p98, %p99
      %p102 = scmp.ne.s32.totalorder %s87, %s101
      %p103 = scmp.eq.s32.totalorder %s44, 0
      %p104 = por %p102, %p103
      %s106 = sadd.s32 %s105, 1
      %p109 = scmp.eq.s32.totalorder %s38, 3
      %p110 = scmp.ne.s32.totalorder %s105, %s107
      %p111 = scmp.eq.s32.totalorder %s38, 0
      %p112 = por %p110, %p111
      %p113 = scmp.ne.s32.totalorder %s105, %s107
      %p114 = scmp.eq.s32.totalorder %s43, 3
      %p115 = por %p113, %p114
      %p116 = scmp.ne.s32.totalorder %s107, %s108
      %p117 = scmp.eq.s32.totalorder %s43, 0
      %p118 = por %p116, %p117
      %p119 = scmp.ne.s32.totalorder %s107, %s108
      %p120 = scmp.eq.s32.totalorder %s44, 3
      %p121 = por %p119, %p120
      %p123 = scmp.ne.s32.totalorder %s108, %s122
      %p124 = scmp.eq.s32.totalorder %s44, 0
      %p125 = por %p123, %p124
      %s126 = ssub.s32 %s46, %s53
      %p127 = scmp.eq.s32.totalorder %s126, 0
      %s129 = sadd.s32 %s128, 1
      %s130 = scalar_select %p127, %s128, %s129
      %p133 = pneg %p127
      %p134 = scmp.eq.s32.totalorder %s38, 3
      %p135 = por %p133, %p134
      %p136 = scmp.ne.s32.totalorder %s128, %s131
      %p137 = scmp.eq.s32.totalorder %s38, 0
      %p138 = por %p136, %p137
      %p139 = scmp.ne.s32.totalorder %s128, %s131
      %p140 = scmp.eq.s32.totalorder %s43, 3
      %p141 = por %p139, %p140
      %p142 = scmp.ne.s32.totalorder %s131, %s132
      %p143 = scmp.eq.s32.totalorder %s43, 0
      %p144 = por %p142, %p143
      %p145 = scmp.ne.s32.totalorder %s131, %s132
      %p146 = scmp.eq.s32.totalorder %s44, 3
      %p147 = por %p145, %p146
      %p149 = scmp.ne.s32.totalorder %s132, %s148
      %p150 = scmp.eq.s32.totalorder %s44, 0
      %p151 = por %p149, %p150
      %s152 = ssub.s32 %s46, %s53
      %p153 = scmp.eq.s32.totalorder %s152, 0
      %s155 = sadd.s32 %s154, 1
      %s156 = scalar_select %p153, %s154, %s155
      %p159 = pneg %p153
      %p160 = scmp.eq.s32.totalorder %s38, 3
      %p161 = por %p159, %p160
      %p162 = scmp.ne.s32.totalorder %s154, %s157
      %p163 = scmp.eq.s32.totalorder %s38, 0
      %p164 = por %p162, %p163
      %p165 = scmp.ne.s32.totalorder %s154, %s157
      %p166 = scmp.eq.s32.totalorder %s43, 3
      %p167 = por %p165, %p166
      %p168 = scmp.ne.s32.totalorder %s157, %s158
      %p169 = scmp.eq.s32.totalorder %s43, 0
      %p170 = por %p168, %p169
      %p171 = scmp.ne.s32.totalorder %s157, %s158
      %p172 = scmp.eq.s32.totalorder %s44, 3
      %p173 = por %p171, %p172
      %p175 = scmp.ne.s32.totalorder %s158, %s174
      %p176 = scmp.eq.s32.totalorder %s44, 0
      %p177 = por %p175, %p176
      %s178 = ssub.s32 %s46, %s53
      %p179 = scmp.eq.s32.totalorder %s178, 0
      %s181 = sadd.s32 %s180, 1
      %s182 = scalar_select %p179, %s180, %s181
      %p185 = pneg %p179
      %p186 = scmp.eq.s32.totalorder %s38, 3
      %p187 = por %p185, %p186
      %p188 = scmp.ne.s32.totalorder %s180, %s183
      %p189 = scmp.eq.s32.totalorder %s38, 0
      %p190 = por %p188, %p189
      %p191 = scmp.ne.s32.totalorder %s180, %s183
      %p192 = scmp.eq.s32.totalorder %s43, 3
      %p193 = por %p191, %p192
      %p194 = scmp.ne.s32.totalorder %s183, %s184
      %p195 = scmp.eq.s32.totalorder %s43, 0
      %p196 = por %p194, %p195
      %p197 = scmp.ne.s32.totalorder %s183, %s184
      %p198 = scmp.eq.s32.totalorder %s44, 3
      %p199 = por %p197, %p198
      %p201 = scmp.ne.s32.totalorder %s184, %s200
      %p202 = scmp.eq.s32.totalorder %s44, 0
      %p203 = por %p201, %p202
      %s204 = ssub.s32 %s46, %s53
      %p205 = scmp.eq.s32.totalorder %s204, 0
      %s207 = sadd.s32 %s206, 1
      %s208 = scalar_select %p205, %s206, %s207
      %p211 = pneg %p205
      %p212 = scmp.eq.s32.totalorder %s38, 3
      %p213 = por %p211, %p212
      %p214 = scmp.ne.s32.totalorder %s206, %s209
      %p215 = scmp.eq.s32.totalorder %s38, 0
      %p216 = por %p214, %p215
      %p217 = scmp.ne.s32.totalorder %s206, %s209
      %p218 = scmp.eq.s32.totalorder %s43, 3
      %p219 = por %p217, %p218
      %p220 = scmp.ne.s32.totalorder %s209, %s210
      %p221 = scmp.eq.s32.totalorder %s43, 0
      %p222 = por %p220, %p221
      %p223 = scmp.ne.s32.totalorder %s209, %s210
      %p224 = scmp.eq.s32.totalorder %s44, 3
      %p225 = por %p223, %p224
      %p227 = scmp.ne.s32.totalorder %s210, %s226
      %p228 = scmp.eq.s32.totalorder %s44, 0
      %p229 = por %p227, %p228
      %s230 = ssub.s32 %s46, %s53
      %p231 = scmp.eq.s32.totalorder %s230, 0
      %s233 = sadd.s32 %s232, 1
      %s234 = scalar_select %p231, %s232, %s233
      %p237 = pneg %p231
      %p238 = scmp.eq.s32.totalorder %s38, 3
      %p239 = por %p237, %p238
      %p240 = scmp.ne.s32.totalorder %s232, %s235
      %p241 = scmp.eq.s32.totalorder %s38, 0
      %p242 = por %p240, %p241
      %p243 = scmp.ne.s32.totalorder %s232, %s235
      %p244 = scmp.eq.s32.totalorder %s43, 3
      %p245 = por %p243, %p244
      %p246 = scmp.ne.s32.totalorder %s235, %s236
      %p247 = scmp.eq.s32.totalorder %s43, 0
      %p248 = por %p246, %p247
      %p249 = scmp.ne.s32.totalorder %s235, %s236
      %p250 = scmp.eq.s32.totalorder %s44, 3
      %p251 = por %p249, %p250
      %p253 = scmp.ne.s32.totalorder %s236, %s252
      %p254 = scmp.eq.s32.totalorder %s44, 0
      %p255 = por %p253, %p254
      %s256 = ssub.s32 %s46, %s53
      %p257 = scmp.eq.s32.totalorder %s256, 0
      %s259 = sadd.s32 %s258, 1
      %s260 = scalar_select %p257, %s258, %s259
      %p263 = pneg %p257
      %p264 = scmp.eq.s32.totalorder %s38, 3
      %p265 = por %p263, %p264
      %p266 = scmp.ne.s32.totalorder %s258, %s261
      %p267 = scmp.eq.s32.totalorder %s38, 0
      %p268 = por %p266, %p267
      %p269 = scmp.ne.s32.totalorder %s258, %s261
      %p270 = scmp.eq.s32.totalorder %s43, 3
      %p271 = por %p269, %p270
      %p272 = scmp.ne.s32.totalorder %s261, %s262
      %p273 = scmp.eq.s32.totalorder %s43, 0
      %p274 = por %p272, %p273
      %p275 = scmp.ne.s32.totalorder %s261, %s262
      %p276 = scmp.eq.s32.totalorder %s44, 3
      %p277 = por %p275, %p276
      %p279 = scmp.ne.s32.totalorder %s262, %s278
      %p280 = scmp.eq.s32.totalorder %s44, 0
      %p281 = por %p279, %p280
      %s282 = ssub.s32 %s46, %s53
      %p283 = scmp.eq.s32.totalorder %s282, 0
      %s285 = sadd.s32 %s284, 1
      %s286 = scalar_select %p283, %s284, %s285
      %p289 = pneg %p283
      %p290 = scmp.eq.s32.totalorder %s38, 3
      %p291 = por %p289, %p290
      %p292 = scmp.ne.s32.totalorder %s284, %s287
      %p293 = scmp.eq.s32.totalorder %s38, 0
      %p294 = por %p292, %p293
      %p295 = scmp.ne.s32.totalorder %s284, %s287
      %p296 = scmp.eq.s32.totalorder %s43, 3
      %p297 = por %p295, %p296
      %p298 = scmp.ne.s32.totalorder %s287, %s288
      %p299 = scmp.eq.s32.totalorder %s43, 0
      %p300 = por %p298, %p299
      %p301 = scmp.ne.s32.totalorder %s287, %s288
      %p302 = scmp.eq.s32.totalorder %s44, 3
      %p303 = por %p301, %p302
      %p305 = scmp.ne.s32.totalorder %s288, %s304
      %p306 = scmp.eq.s32.totalorder %s44, 0
      %p307 = por %p305, %p306
      %s308 = ssub.s32 %s46, %s53
      %p309 = scmp.eq.s32.totalorder %s308, 0
      %s311 = sadd.s32 %s310, 1
      %s312 = scalar_select %p309, %s310, %s311
      %p315 = pneg %p309
      %p316 = scmp.eq.s32.totalorder %s38, 3
      %p317 = por %p315, %p316
      %p318 = scmp.ne.s32.totalorder %s310, %s313
      %p319 = scmp.eq.s32.totalorder %s38, 0
      %p320 = por %p318, %p319
      %p321 = scmp.ne.s32.totalorder %s310, %s313
      %p322 = scmp.eq.s32.totalorder %s43, 3
      %p323 = por %p321, %p322
      %p324 = scmp.ne.s32.totalorder %s313, %s314
      %p325 = scmp.eq.s32.totalorder %s43, 0
      %p326 = por %p324, %p325
      %p327 = scmp.ne.s32.totalorder %s313, %s314
      %p328 = scmp.eq.s32.totalorder %s44, 3
      %p329 = por %p327, %p328
      %p331 = scmp.ne.s32.totalorder %s314, %s330
      %p332 = scmp.eq.s32.totalorder %s44, 0
      %p333 = por %p331, %p332
      %s334 = ssub.s32 %s46, %s53
      %p335 = scmp.eq.s32.totalorder %s334, 0
      %s337 = sadd.s32 %s336, 1
      %s338 = scalar_select %p335, %s336, %s337
      %p341 = pneg %p335
      %p342 = scmp.eq.s32.totalorder %s38, 3
      %p343 = por %p341, %p342
      %p344 = scmp.ne.s32.totalorder %s336, %s339
      %p345 = scmp.eq.s32.totalorder %s38, 0
      %p346 = por %p344, %p345
      %p347 = scmp.ne.s32.totalorder %s336, %s339
      %p348 = scmp.eq.s32.totalorder %s43, 3
      %p349 = por %p347, %p348
      %p350 = scmp.ne.s32.totalorder %s339, %s340
      %p351 = scmp.eq.s32.totalorder %s43, 0
      %p352 = por %p350, %p351
      %p353 = scmp.ne.s32.totalorder %s339, %s340
      %p354 = scmp.eq.s32.totalorder %s44, 3
      %p355 = por %p353, %p354
      %p357 = scmp.ne.s32.totalorder %s340, %s356
      %p358 = scmp.eq.s32.totalorder %s44, 0
      %p359 = por %p357, %p358
      %s360 = ssub.s32 %s46, %s53
      %p361 = scmp.eq.s32.totalorder %s360, 0
      %s363 = sadd.s32 %s362, 1
      %s364 = scalar_select %p361, %s362, %s363
      %p367 = pneg %p361
      %p368 = scmp.eq.s32.totalorder %s38, 3
      %p369 = por %p367, %p368
      %p370 = scmp.ne.s32.totalorder %s362, %s365
      %p371 = scmp.eq.s32.totalorder %s38, 0
      %p372 = por %p370, %p371
      %p373 = scmp.ne.s32.totalorder %s362, %s365
      %p374 = scmp.eq.s32.totalorder %s43, 3
      %p375 = por %p373, %p374
      %p376 = scmp.ne.s32.totalorder %s365, %s366
      %p377 = scmp.eq.s32.totalorder %s43, 0
      %p378 = por %p376, %p377
      %p379 = scmp.ne.s32.totalorder %s365, %s366
      %p380 = scmp.eq.s32.totalorder %s44, 3
      %p381 = por %p379, %p380
      %p383 = scmp.ne.s32.totalorder %s366, %s382
      %p384 = scmp.eq.s32.totalorder %s44, 0
      %p385 = por %p383, %p384
      %s386 = ssub.s32 %s46, %s53
      %p387 = scmp.eq.s32.totalorder %s386, 0
      %s389 = sadd.s32 %s388, 1
      %s390 = scalar_select %p387, %s388, %s389
      %p393 = pneg %p387
      %p394 = scmp.eq.s32.totalorder %s38, 3
      %p395 = por %p393, %p394
      %p396 = scmp.ne.s32.totalorder %s388, %s391
      %p397 = scmp.eq.s32.totalorder %s38, 0
      %p398 = por %p396, %p397
      %p399 = scmp.ne.s32.totalorder %s388, %s391
      %p400 = scmp.eq.s32.totalorder %s43, 3
      %p401 = por %p399, %p400
      %p402 = scmp.ne.s32.totalorder %s391, %s392
      %p403 = scmp.eq.s32.totalorder %s43, 0
      %p404 = por %p402, %p403
      %p405 = scmp.ne.s32.totalorder %s391, %s392
      %p406 = scmp.eq.s32.totalorder %s44, 3
      %p407 = por %p405, %p406
      %p409 = scmp.ne.s32.totalorder %s392, %s408
      %p410 = scmp.eq.s32.totalorder %s44, 0
      %p411 = por %p409, %p410
      %s412 = ssub.s32 %s46, %s53
      %p413 = scmp.eq.s32.totalorder %s412, 0
      %s415 = sadd.s32 %s414, 1
      %s416 = scalar_select %p413, %s414, %s415
      %p419 = pneg %p413
      %p420 = scmp.eq.s32.totalorder %s38, 3
      %p421 = por %p419, %p420
      %p422 = scmp.ne.s32.totalorder %s414, %s417
      %p423 = scmp.eq.s32.totalorder %s38, 0
      %p424 = por %p422, %p423
      %p425 = scmp.ne.s32.totalorder %s414, %s417
      %p426 = scmp.eq.s32.totalorder %s43, 3
      %p427 = por %p425, %p426
      %p428 = scmp.ne.s32.totalorder %s417, %s418
      %p429 = scmp.eq.s32.totalorder %s43, 0
      %p430 = por %p428, %p429
      %p431 = scmp.ne.s32.totalorder %s417, %s418
      %p432 = scmp.eq.s32.totalorder %s44, 3
      %p433 = por %p431, %p432
      %p435 = scmp.ne.s32.totalorder %s418, %s434
      %p436 = scmp.eq.s32.totalorder %s44, 0
      %p437 = por %p435, %p436
      %s439 = sadd.s32 %s438, 1
      %p442 = scmp.eq.s32.totalorder %s38, 3
      %p443 = scmp.ne.s32.totalorder %s438, %s440
      %p444 = scmp.eq.s32.totalorder %s38, 0
      %p445 = por %p443, %p444
      %p446 = scmp.ne.s32.totalorder %s438, %s440
      %p447 = scmp.eq.s32.totalorder %s43, 3
      %p448 = por %p446, %p447
      %p449 = scmp.ne.s32.totalorder %s440, %s441
      %p450 = scmp.eq.s32.totalorder %s43, 0
      %p451 = por %p449, %p450
      %p452 = scmp.ne.s32.totalorder %s440, %s441
      %p453 = scmp.eq.s32.totalorder %s44, 3
      %p454 = por %p452, %p453
      %p456 = scmp.ne.s32.totalorder %s441, %s455
      %p457 = scmp.eq.s32.totalorder %s44, 0
      %p458 = por %p456, %p457
      %s460 = sadd.s32 %s459, 1
      %p463 = scmp.eq.s32.totalorder %s38, 3
      %p464 = scmp.ne.s32.totalorder %s459, %s461
      %p465 = scmp.eq.s32.totalorder %s38, 0
      %p466 = por %p464, %p465
      %p467 = scmp.ne.s32.totalorder %s459, %s461
      %p468 = scmp.eq.s32.totalorder %s43, 3
      %p469 = por %p467, %p468
      %p470 = scmp.ne.s32.totalorder %s461, %s462
      %p471 = scmp.eq.s32.totalorder %s43, 0
      %p472 = por %p470, %p471
      %p473 = scmp.ne.s32.totalorder %s461, %s462
      %p474 = scmp.eq.s32.totalorder %s44, 3
      %p475 = por %p473, %p474
      %p477 = scmp.ne.s32.totalorder %s462, %s476
      %p478 = scmp.eq.s32.totalorder %s44, 0
      %p479 = por %p477, %p478
      %s480 = ssub.s32 %s45, %s57
      %p481 = scmp.eq.s32.totalorder %s480, 0
      %s483 = sadd.s32 %s482, 1
      %s484 = scalar_select %p481, %s482, %s483
      %p487 = pneg %p481
      %p488 = scmp.eq.s32.totalorder %s38, 3
      %p489 = por %p487, %p488
      %p490 = scmp.ne.s32.totalorder %s482, %s485
      %p491 = scmp.eq.s32.totalorder %s38, 0
      %p492 = por %p490, %p491
      %p493 = scmp.ne.s32.totalorder %s482, %s485
      %p494 = scmp.eq.s32.totalorder %s43, 3
      %p495 = por %p493, %p494
      %p496 = scmp.ne.s32.totalorder %s485, %s486
      %p497 = scmp.eq.s32.totalorder %s43, 0
      %p498 = por %p496, %p497
      %p499 = scmp.ne.s32.totalorder %s485, %s486
      %p500 = scmp.eq.s32.totalorder %s44, 3
      %p501 = por %p499, %p500
      %p503 = scmp.ne.s32.totalorder %s486, %s502
      %p504 = scmp.eq.s32.totalorder %s44, 0
      %p505 = por %p503, %p504
      %s506 = ssub.s32 %s45, %s57
      %p507 = scmp.eq.s32.totalorder %s506, 0
      %s509 = sadd.s32 %s508, 1
      %s510 = scalar_select %p507, %s508, %s509
      %p513 = pneg %p507
      %p514 = scmp.eq.s32.totalorder %s38, 3
      %p515 = por %p513, %p514
      %p516 = scmp.ne.s32.totalorder %s508, %s511
      %p517 = scmp.eq.s32.totalorder %s38, 0
      %p518 = por %p516, %p517
      %p519 = scmp.ne.s32.totalorder %s508, %s511
      %p520 = scmp.eq.s32.totalorder %s43, 3
      %p521 = por %p519, %p520
      %p522 = scmp.ne.s32.totalorder %s511, %s512
      %p523 = scmp.eq.s32.totalorder %s43, 0
      %p524 = por %p522, %p523
      %p525 = scmp.ne.s32.totalorder %s511, %s512
      %p526 = scmp.eq.s32.totalorder %s44, 3
      %p527 = por %p525, %p526
      %p529 = scmp.ne.s32.totalorder %s512, %s528
      %p530 = scmp.eq.s32.totalorder %s44, 0
      %p531 = por %p529, %p530
      %p532 = scmp.le.s32.totalorder 1, %s38
      %p533 = scmp.lt.s32.totalorder %s38, 5
      %p534 = pnand %p532, %p533
      %p535 = pneg %p534
      // Predicated region
      $region9: #{bert_forward.1} parent=5 // pred_check
        _
      $region10: #{bert_forward.1} parent=5 // pred_check_branch
        %537 = sbr.rel (%p534) target = $region12
      $region11: #{bert_forward.1} parent=5 // pred_region
        %s538 = ssub.s32 %s38, 1
        // Predicated region
        $region13: #{bert_forward.1} parent=11 // pred_check
          %p539 = pneg %p97
        $region14: #{bert_forward.1} parent=11 // pred_check_branch
          %541 = sbr.rel (%p539) target = $region16
        $region15: #{bert_forward.1} parent=11 // pred_region
          _
        $region16: #{bert_forward.1} parent=11 // pred_fallthru
          _
        // Predicated region
        $region17: #{bert_forward.1} parent=11 // pred_check
          %p542 = pneg %p118
        $region18: #{bert_forward.1} parent=11 // pred_check_branch
          %544 = sbr.rel (%p542) target = $region20
        $region19: #{bert_forward.1} parent=11 // pred_region
          _
        $region20: #{bert_forward.1} parent=11 // pred_fallthru
          _
        // Predicated region
        $region21: #{bert_forward.1} parent=11 // pred_check
          %p545 = pneg %p451
        $region22: #{bert_forward.1} parent=11 // pred_check_branch
          %547 = sbr.rel (%p545) target = $region24
        $region23: #{bert_forward.1} parent=11 // pred_region
          _
        $region24: #{bert_forward.1} parent=11 // pred_fallthru
          _
        // Predicated region
        $region25: #{bert_forward.1} parent=11 // pred_check
          %p548 = pneg %p472
        $region26: #{bert_forward.1} parent=11 // pred_check_branch
          %550 = sbr.rel (%p548) target = $region28
        $region27: #{bert_forward.1} parent=11 // pred_region
          _
        $region28: #{bert_forward.1} parent=11 // pred_fallthru
          _
      $region12: #{bert_forward.1} parent=5 // pred_fallthru
        _
      %p551 = scmp.lt.s32.totalorder %s38, 4
      // Predicated region
      $region29: #{bert_forward.1} parent=5 // pred_check
        %p552 = pneg %p551
      $region30: #{bert_forward.1} parent=5 // pred_check_branch
        %554 = sbr.rel (%p552) target = $region32
      $region31: #{bert_forward.1} parent=5 // pred_region
        // Predicated region
        $region33: #{bert_forward.1} parent=31 // pred_check
          %p555 = pneg %p70
        $region34: #{bert_forward.1} parent=31 // pred_check_branch
          %557 = sbr.rel (%p555) target = $region36
        $region35: #{bert_forward.1} parent=31 // pred_region
          %p558 = scmp.lt.s32.totalorder %s45, 1
          %s559 = scalar_select %p558, %s45, 1
          %s560 = smul.addr %s559, 8
          %s561 = scalar_lea.vmem %s1, %s560
        $region36: #{bert_forward.1} parent=31 // pred_fallthru
          _
        // Predicated region
        $region37: #{bert_forward.1} parent=31 // pred_check
          %p562 = pneg %p138
        $region38: #{bert_forward.1} parent=31 // pred_check_branch
          %564 = sbr.rel (%p562) target = $region40
        $region39: #{bert_forward.1} parent=31 // pred_region
          %p565 = scmp.lt.s32.totalorder %s46, 1
          %s566 = scalar_select %p565, %s46, 1
          %s567 = smul.addr %s566, 4
          %s568 = smul.addr %s567, 4
          %s569 = scalar_lea.vmem %s4, %s568
        $region40: #{bert_forward.1} parent=31 // pred_fallthru
          _
        // Predicated region
        $region41: #{bert_forward.1} parent=31 // pred_check
          %p570 = pneg %p164
        $region42: #{bert_forward.1} parent=31 // pred_check_branch
          %572 = sbr.rel (%p570) target = $region44
        $region43: #{bert_forward.1} parent=31 // pred_region
          %p573 = scmp.lt.s32.totalorder %s46, 1
          %s574 = scalar_select %p573, %s46, 1
          %s575 = scalar_lea.vmem %s5, %s574
        $region44: #{bert_forward.1} parent=31 // pred_fallthru
          _
        // Predicated region
        $region45: #{bert_forward.1} parent=31 // pred_check
          %p576 = pneg %p190
        $region46: #{bert_forward.1} parent=31 // pred_check_branch
          %578 = sbr.rel (%p576) target = $region48
        $region47: #{bert_forward.1} parent=31 // pred_region
          %p579 = scmp.lt.s32.totalorder %s46, 1
          %s580 = scalar_select %p579, %s46, 1
          %s581 = smul.addr %s580, 4
          %s582 = smul.addr %s581, 4
          %s583 = scalar_lea.vmem %s6, %s582
        $region48: #{bert_forward.1} parent=31 // pred_fallthru
          _
        // Predicated region
        $region49: #{bert_forward.1} parent=31 // pred_check
          %p584 = pneg %p216
        $region50: #{bert_forward.1} parent=31 // pred_check_branch
          %586 = sbr.rel (%p584) target = $region52
        $region51: #{bert_forward.1} parent=31 // pred_region
          %p587 = scmp.lt.s32.totalorder %s46, 1
          %s588 = scalar_select %p587, %s46, 1
          %s589 = scalar_lea.vmem %s7, %s588
        $region52: #{bert_forward.1} parent=31 // pred_fallthru
          _
        // Predicated region
        $region53: #{bert_forward.1} parent=31 // pred_check
          %p590 = pneg %p242
        $region54: #{bert_forward.1} parent=31 // pred_check_branch
          %592 = sbr.rel (%p590) target = $region56
        $region55: #{bert_forward.1} parent=31 // pred_region
          %p593 = scmp.lt.s32.totalorder %s46, 1
          %s594 = scalar_select %p593, %s46, 1
          %s595 = scalar_lea.vmem %s8, %s594
        $region56: #{bert_forward.1} parent=31 // pred_fallthru
          _
        // Predicated region
        $region57: #{bert_forward.1} parent=31 // pred_check
          %p596 = pneg %p268
        $region58: #{bert_forward.1} parent=31 // pred_check_branch
          %598 = sbr.rel (%p596) target = $region60
        $region59: #{bert_forward.1} parent=31 // pred_region
          %p599 = scmp.lt.s32.totalorder %s46, 1
          %s600 = scalar_select %p599, %s46, 1
          %s601 = scalar_lea.vmem %s9, %s600
        $region60: #{bert_forward.1} parent=31 // pred_fallthru
          _
        // Predicated region
        $region61: #{bert_forward.1} parent=31 // pred_check
          %p602 = pneg %p294
        $region62: #{bert_forward.1} parent=31 // pred_check_branch
          %604 = sbr.rel (%p602) target = $region64
        $region63: #{bert_forward.1} parent=31 // pred_region
          %p605 = scmp.lt.s32.totalorder %s46, 1
          %s606 = scalar_select %p605, %s46, 1
          %s607 = smul.addr %s606, 4
          %s608 = smul.addr %s607, 4
          %s609 = scalar_lea.vmem %s10, %s608
        $region64: #{bert_forward.1} parent=31 // pred_fallthru
          _
        // Predicated region
        $region65: #{bert_forward.1} parent=31 // pred_check
          %p610 = pneg %p320
        $region66: #{bert_forward.1} parent=31 // pred_check_branch
          %612 = sbr.rel (%p610) target = $region68
        $region67: #{bert_forward.1} parent=31 // pred_region
          %p613 = scmp.lt.s32.totalorder %s46, 1
          %s614 = scalar_select %p613, %s46, 1
          %s615 = scalar_lea.vmem %s11, %s614
        $region68: #{bert_forward.1} parent=31 // pred_fallthru
          _
        // Predicated region
        $region69: #{bert_forward.1} parent=31 // pred_check
          %p616 = pneg %p346
        $region70: #{bert_forward.1} parent=31 // pred_check_branch
          %618 = sbr.rel (%p616) target = $region72
        $region71: #{bert_forward.1} parent=31 // pred_region
          %p619 = scmp.lt.s32.totalorder %s46, 1
          %s620 = scalar_select %p619, %s46, 1
          %s621 = smul.addr %s620, 8
          %s622 = smul.addr %s621, 4
          %s623 = scalar_lea.vmem %s12, %s622
        $region72: #{bert_forward.1} parent=31 // pred_fallthru
          _
        // Predicated region
        $region73: #{bert_forward.1} parent=31 // pred_check
          %p624 = pneg %p372
        $region74: #{bert_forward.1} parent=31 // pred_check_branch
          %626 = sbr.rel (%p624) target = $region76
        $region75: #{bert_forward.1} parent=31 // pred_region
          %p627 = scmp.lt.s32.totalorder %s46, 1
          %s628 = scalar_select %p627, %s46, 1
          %s629 = scalar_lea.vmem %s13, %s628
        $region76: #{bert_forward.1} parent=31 // pred_fallthru
          _
        // Predicated region
        $region77: #{bert_forward.1} parent=31 // pred_check
          %p630 = pneg %p398
        $region78: #{bert_forward.1} parent=31 // pred_check_branch
          %632 = sbr.rel (%p630) target = $region80
        $region79: #{bert_forward.1} parent=31 // pred_region
          %p633 = scmp.lt.s32.totalorder %s46, 1
          %s634 = scalar_select %p633, %s46, 1
          %s635 = scalar_lea.vmem %s14, %s634
        $region80: #{bert_forward.1} parent=31 // pred_fallthru
          _
        // Predicated region
        $region81: #{bert_forward.1} parent=31 // pred_check
          %p636 = pneg %p424
        $region82: #{bert_forward.1} parent=31 // pred_check_branch
          %638 = sbr.rel (%p636) target = $region84
        $region83: #{bert_forward.1} parent=31 // pred_region
          %p639 = scmp.lt.s32.totalorder %s46, 1
          %s640 = scalar_select %p639, %s46, 1
          %s641 = scalar_lea.vmem %s15, %s640
        $region84: #{bert_forward.1} parent=31 // pred_fallthru
          _
      $region32: #{bert_forward.1} parent=5 // pred_fallthru
        _
      %p642 = scmp.le.s32.totalorder 1, %s38
      %p643 = scmp.lt.s32.totalorder %s38, 5
      %p644 = pnand %p642, %p643
      %p645 = pneg %p644
      // Predicated region
      $region85: #{bert_forward.1} parent=5 // pred_check
        _
      $region86: #{bert_forward.1} parent=5 // pred_check_branch
        %647 = sbr.rel (%p644) target = $region88
      $region87: #{bert_forward.1} parent=5 // pred_region
        %s648 = ssub.s32 %s38, 1
        %p649 = scmp.lt.s32.totalorder %s47, 1
        %s650 = scalar_select %p649, %s47, 1
        %s651 = smul.addr %s650, 8
        %s652 = scalar_lea.vmem %s1, %s651
        %p653 = pneg %p76
        %p654 = pneg %p73
        %p655 = pneg %p97
        %p656 = pneg %p94
        %p657 = pneg %p118
        %p658 = pneg %p115
        %p659 = scmp.lt.s32.totalorder %s48, 1
        %s660 = scalar_select %p659, %s48, 1
        %s661 = smul.addr %s660, 4
        %s662 = smul.addr %s661, 4
        %s663 = scalar_lea.vmem %s4, %s662
        %p664 = pneg %p144
        %p665 = pneg %p141
        %p666 = scmp.lt.s32.totalorder %s48, 1
        %s667 = scalar_select %p666, %s48, 1
        %s668 = scalar_lea.vmem %s5, %s667
        %p669 = pneg %p170
        %p670 = pneg %p167
        %p671 = scmp.lt.s32.totalorder %s48, 1
        %s672 = scalar_select %p671, %s48, 1
        %s673 = smul.addr %s672, 4
        %s674 = smul.addr %s673, 4
        %s675 = scalar_lea.vmem %s6, %s674
        %p676 = pneg %p196
        %p677 = pneg %p193
        %p678 = scmp.lt.s32.totalorder %s48, 1
        %s679 = scalar_select %p678, %s48, 1
        %s680 = scalar_lea.vmem %s7, %s679
        %p681 = pneg %p222
        %p682 = pneg %p219
        %p683 = scmp.lt.s32.totalorder %s48, 1
        %s684 = scalar_select %p683, %s48, 1
        %s685 = scalar_lea.vmem %s8, %s684
        %p686 = pneg %p248
        %p687 = pneg %p245
        %p688 = scmp.lt.s32.totalorder %s48, 1
        %s689 = scalar_select %p688, %s48, 1
        %s690 = scalar_lea.vmem %s9, %s689
        %p691 = pneg %p274
        %p692 = pneg %p271
        %p693 = scmp.lt.s32.totalorder %s48, 1
        %s694 = scalar_select %p693, %s48, 1
        %s695 = smul.addr %s694, 4
        %s696 = smul.addr %s695, 4
        %s697 = scalar_lea.vmem %s10, %s696
        %p698 = pneg %p300
        %p699 = pneg %p297
        %p700 = scmp.lt.s32.totalorder %s48, 1
        %s701 = scalar_select %p700, %s48, 1
        %s702 = scalar_lea.vmem %s11, %s701
        %p703 = pneg %p326
        %p704 = pneg %p323
        %p705 = scmp.lt.s32.totalorder %s48, 1
        %s706 = scalar_select %p705, %s48, 1
        %s707 = smul.addr %s706, 8
        %s708 = smul.addr %s707, 4
        %s709 = scalar_lea.vmem %s12, %s708
        %p710 = pneg %p352
        %p711 = pneg %p349
        %p712 = scmp.lt.s32.totalorder %s48, 1
        %s713 = scalar_select %p712, %s48, 1
        %s714 = scalar_lea.vmem %s13, %s713
        %p715 = pneg %p378
        %p716 = pneg %p375
        %p717 = scmp.lt.s32.totalorder %s48, 1
        %s718 = scalar_select %p717, %s48, 1
        %s719 = scalar_lea.vmem %s14, %s718
        %p720 = pneg %p404
        %p721 = pneg %p401
        %p722 = scmp.lt.s32.totalorder %s48, 1
        %s723 = scalar_select %p722, %s48, 1
        %s724 = scalar_lea.vmem %s15, %s723
        %p725 = pneg %p430
        %p726 = pneg %p427
        %p727 = pneg %p451
        %p728 = pneg %p448
        %p729 = pneg %p472
        %p730 = pneg %p469
        %p731 = pneg %p498
        %p732 = pneg %p495
        %s733 = sand.u32 %s485, 1
        %s734 = scalar_lea.sflag [#allocation7], %s733
        %s735 = sand.u32 %s485, 1
        %s736 = smul.addr %s735, 8
        %s737 = scalar_lea.vmem [#allocation6], %s736
        %p738 = pneg %p524
        %p739 = pneg %p521
        %s740 = sand.u32 %s511, 1
        %s741 = scalar_lea.sflag [#allocation9], %s740
        %s742 = sand.u32 %s511, 1
        %s743 = scalar_lea.vmem [#allocation8], %s742
        %p744 = scmp.lt.s32.totalorder %s47, 1
        %s745 = scalar_select %p744, %s47, 1
        %s746 = smul.addr %s745, 8
        %s747 = scalar_lea.vmem %s1, %s746
        %p748 = scmp.lt.s32.totalorder %s48, 1
        %s749 = scalar_select %p748, %s48, 1
        %s750 = smul.addr %s749, 4
        %s751 = smul.addr %s750, 4
        %s752 = scalar_lea.vmem %s4, %s751
        %p753 = scmp.lt.s32.totalorder %s48, 1
        %s754 = scalar_select %p753, %s48, 1
        %s755 = scalar_lea.vmem %s5, %s754
        %p756 = scmp.lt.s32.totalorder %s48, 1
        %s757 = scalar_select %p756, %s48, 1
        %s758 = smul.addr %s757, 4
        %s759 = smul.addr %s758, 4
        %s760 = scalar_lea.vmem %s6, %s759
        %p761 = scmp.lt.s32.totalorder %s48, 1
        %s762 = scalar_select %p761, %s48, 1
        %s763 = scalar_lea.vmem %s7, %s762
        %p764 = scmp.lt.s32.totalorder %s48, 1
        %s765 = scalar_select %p764, %s48, 1
        %s766 = scalar_lea.vmem %s8, %s765
        %p767 = scmp.lt.s32.totalorder %s48, 1
        %s768 = scalar_select %p767, %s48, 1
        %s769 = scalar_lea.vmem %s9, %s768
        %p770 = scmp.lt.s32.totalorder %s48, 1
        %s771 = scalar_select %p770, %s48, 1
        %s772 = smul.addr %s771, 4
        %s773 = smul.addr %s772, 4
        %s774 = scalar_lea.vmem %s10, %s773
        %p775 = scmp.lt.s32.totalorder %s48, 1
        %s776 = scalar_select %p775, %s48, 1
        %s777 = scalar_lea.vmem %s11, %s776
        %p778 = scmp.lt.s32.totalorder %s48, 1
        %s779 = scalar_select %p778, %s48, 1
        %s780 = smul.addr %s779, 8
        %s781 = smul.addr %s780, 4
        %s782 = scalar_lea.vmem %s12, %s781
        %p783 = scmp.lt.s32.totalorder %s48, 1
        %s784 = scalar_select %p783, %s48, 1
        %s785 = scalar_lea.vmem %s13, %s784
        %p786 = scmp.lt.s32.totalorder %s48, 1
        %s787 = scalar_select %p786, %s48, 1
        %s788 = scalar_lea.vmem %s14, %s787
        %p789 = scmp.lt.s32.totalorder %s48, 1
        %s790 = scalar_select %p789, %s48, 1
        %s791 = scalar_lea.vmem %s15, %s790
        %p793 = scmp.eq.s32.totalorder %s48, 0
        // Predicated region
        $region89: #{bert_forward.1} parent=87 // pred_check
          %p794 = pneg %p793
        $region90: #{bert_forward.1} parent=87 // pred_check_branch
          %796 = sbr.rel (%p794) target = $region92
        $region91: #{bert_forward.1} parent=87 // pred_region
          %v797 = vld [vmem:[%s747] sm:$0xff]
          %v798 = vld [vmem:[%s2] sm:$0x1]
          %v799 = vld [vmem:[%s3] sm:$0x1]
          %vm800 = vcmask 261120
          %v801 = vsel %vm800, %v797, 0.0
          %802 = vadd.xlane.f32.xlu0 %v801
          %v803 = vpop.xlane.xlu0 %802
          %v804 = vrcp.pop 32.0
          %v805 = vmul.f32 %v803, %v804
          %v806 = vsub.f32 %v797, %v805
          %v807 = vmul.f32 %v806, %v806
          %v808 = vsel %vm800, %v807, 0.0
          %809 = vadd.xlane.f32.xlu0 %v808
          %v810 = vpop.xlane.xlu0 %809
          %v811 = vmul.f32 %v810, %v804
          %v812 = vadd.f32 %v811, 1e-12
          %v813 = vrsqrt.pop %v812
          %v814 = vmul.f32 %v806, %v813
          %v816 = vlaneseq
          %v817 = vshrl.u32 %v816, 7
          %v818 = vsub.s32 0, %v817
          %v819 = vrot.slane %v798, %v818
          %v821 = vmul.f32 %v814, %v819
          %v823 = vlaneseq
          %v824 = vshrl.u32 %v823, 7
          %v825 = vsub.s32 0, %v824
          %v826 = vrot.slane %v799, %v825
          %v828 = vadd.f32 %v821, %v826
          %829 = vst.msk [vmem:[#allocation2] sm:$0xff] %vm800, %v828
        $region92: #{bert_forward.1} parent=87 // pred_fallthru
          _
        %v830 = vld [vmem:[#allocation2] sm:$0xff]
        %v831 = vlaneseq
        %v832 = vand.u32 %v831, 127
        %s833 = smul.u32 %s47, 128
        %s834 = sld [smem:[#allocation5 + %s833]]
        %p835 = scmp.gt.s32.totalorder %s834, 0
        %s836 = scalar_select %p835, 0.0, -10000.0
        %vm837 = vcmp.eq.s32.totalorder %v832, 0
        %v838 = vstv %s836
        %v839 = vsel %vm837, %v838, 0.0
        %s840 = sadd.s32 %s833, 1
        %s841 = sld [smem:[#allocation5 + %s840]]
        %p842 = scmp.gt.s32.totalorder %s841, 0
        %s843 = scalar_select %p842, 0.0, -10000.0
        %vm844 = vcmp.eq.s32.totalorder %v832, 1
        %v845 = vstv %s843
        %v846 = vsel %vm844, %v845, %v839
        %s847 = sadd.s32 %s833, 2
        %s848 = sld [smem:[#allocation5 + %s847]]
        %p849 = scmp.gt.s32.totalorder %s848, 0
        %s850 = scalar_select %p849, 0.0, -10000.0
        %vm851 = vcmp.eq.s32.totalorder %v832, 2
        %v852 = vstv %s850
        %v853 = vsel %vm851, %v852, %v846
        %s854 = sadd.s32 %s833, 3
        %s855 = sld [smem:[#allocation5 + %s854]]
        %p856 = scmp.gt.s32.totalorder %s855, 0
        %s857 = scalar_select %p856, 0.0, -10000.0
        %vm858 = vcmp.eq.s32.totalorder %v832, 3
        %v859 = vstv %s857
        %v860 = vsel %vm858, %v859, %v853
        %s861 = sadd.s32 %s833, 4
        %s862 = sld [smem:[#allocation5 + %s861]]
        %p863 = scmp.gt.s32.totalorder %s862, 0
        %s864 = scalar_select %p863, 0.0, -10000.0
        %vm865 = vcmp.eq.s32.totalorder %v832, 4
        %v866 = vstv %s864
        %v867 = vsel %vm865, %v866, %v860
        %s868 = sadd.s32 %s833, 5
        %s869 = sld [smem:[#allocation5 + %s868]]
        %p870 = scmp.gt.s32.totalorder %s869, 0
        %s871 = scalar_select %p870, 0.0, -10000.0
        %vm872 = vcmp.eq.s32.totalorder %v832, 5
        %v873 = vstv %s871
        %v874 = vsel %vm872, %v873, %v867
        %s875 = sadd.s32 %s833, 6
        %s876 = sld [smem:[#allocation5 + %s875]]
        %p877 = scmp.gt.s32.totalorder %s876, 0
        %s878 = scalar_select %p877, 0.0, -10000.0
        %vm879 = vcmp.eq.s32.totalorder %v832, 6
        %v880 = vstv %s878
        %v881 = vsel %vm879, %v880, %v874
        %s882 = sadd.s32 %s833, 7
        %s883 = sld [smem:[#allocation5 + %s882]]
        %p884 = scmp.gt.s32.totalorder %s883, 0
        %s885 = scalar_select %p884, 0.0, -10000.0
        %vm886 = vcmp.eq.s32.totalorder %v832, 7
        %v887 = vstv %s885
        %v888 = vsel %vm886, %v887, %v881
        %v889 = vpack.c.bf16 %v830, %v830
        %v890 = vld [vmem:[%s752] sm:$0xf]
        %v891 = vld [vmem:[%s752 + $0x4] sm:$0xf]
        %v892 = vld [vmem:[%s752 + $0x8] sm:$0xf]
        %v893 = vld [vmem:[%s752 + $0xc] sm:$0xf]
        %v894 = vld [vmem:[%s755] sm:$0x1]
        %v896 = vlaneseq
        %v897 = vshrl.u32 %v896, 7
        %v898 = vsub.s32 0, %v897
        %v899 = vrot.slane %v894, %v898
        %v905 = vunpack.c.l.b16 %v890
        %v906 = vunpack.c.l.b16 %v891
        %v907 = vunpack.c.l.b16 %v892
        %v908 = vunpack.c.l.b16 %v893
        %v909 = vpack.c.b16 %v906, %v905
        %v910 = vpack.c.b16 %v908, %v907
        %vm913 = vcmask 261120
        %v915 = vsel %vm913, %v889, 0
        %917 = vmatprep.subr.bf16.mxu0 0
        %918 = vmatpush1.bf16.msra.mxu0 0
        %919 = vmatprep.subr.bf16.mxu0 0
        %920 = vmatpush1.bf16.msra.mxu0 0
        %921 = vmatprep.subr.bf16.mxu0 0
        %922 = vmatpush1.bf16.msra.mxu0 0
        %923 = vmatprep.subr.bf16.mxu0 0
        %924 = vmatpush1.bf16.msra.mxu0 0
        %925 = vmatprep.subr.bf16.mxu0 0
        %926 = vmatpush1.bf16.msra.mxu0 0
        %927 = vmatprep.subr.bf16.mxu0 0
        %928 = vmatpush1.bf16.msra.mxu0 0
        %929 = vmatprep.subr.bf16.mxu0 0
        %930 = vmatpush1.bf16.msra.mxu0 %v910
        %931 = vmatprep.subr.bf16.mxu0 0
        %932 = vmatpush1.bf16.msra.mxu0 %v909
        %933 = vmatprep.subr.bf16.mxu0 0
        %934 = vmatpush2.bf16.msra.mxu0 0
        %935 = vmatprep.subr.bf16.mxu0 0
        %936 = vmatpush2.bf16.msra.mxu0 0
        %937 = vmatprep.subr.bf16.mxu0 0
        %938 = vmatpush2.bf16.msra.mxu0 0
        %939 = vmatprep.subr.bf16.mxu0 0
        %940 = vmatpush2.bf16.msra.mxu0 0
        %941 = vmatprep.subr.bf16.mxu0 0
        %942 = vmatpush2.bf16.msra.mxu0 0
        %943 = vmatprep.subr.bf16.mxu0 0
        %944 = vmatpush2.bf16.msra.mxu0 0
        %945 = vmatprep.subr.bf16.mxu0 0
        %946 = vmatpush2.bf16.msra.mxu0 0
        %947 = vmatprep.subr.bf16.mxu0 0
        %948 = vmatpush2.bf16.msra.mxu0 0
        %949 = vmatprep.mubr.bf16.mxu0 0
        %950 = vmatmul.mubr.bf16.gmra.mxu0 %v915
        %v951 = vpop.f32.mrf.mxu0
        %v952 = vadd.f32 %v899, %v951
        %v953 = vpop.f32.mrf.mxu0
        %v954 = vpop.f32.mrf.mxu0
        %v955 = vpop.f32.mrf.mxu0
        %956 = vdwg.mxu0
        %v957 = vpack.c.bf16 %v952, %v952
        %959 = vrot.lane.b32.xlu0 %v957, 96
        %v960 = vpop.permute.xlu0 %959
        %vm961 = vcmask 130048
        %v963 = vsel %vm961, %v957, 0
        %v966 = vsel %vm961, %v960, 0
        %968 = vmatprep.subr.bf16.mxu0 0
        %969 = vmatpush1.bf16.xpose.msra.mxu0 0
        %970 = vmatprep.subr.bf16.mxu0 0
        %971 = vmatpush1.bf16.xpose.msra.mxu0 0
        %972 = vmatprep.subr.bf16.mxu0 0
        %973 = vmatpush1.bf16.xpose.msra.mxu0 0
        %974 = vmatprep.subr.bf16.mxu0 0
        %975 = vmatpush1.bf16.xpose.msra.mxu0 0
        %976 = vmatprep.subr.bf16.mxu0 0
        %977 = vmatpush1.bf16.xpose.msra.mxu0 0
        %978 = vmatprep.subr.bf16.mxu0 0
        %979 = vmatpush1.bf16.xpose.msra.mxu0 0
        %980 = vmatprep.subr.bf16.mxu0 0
        %981 = vmatpush1.bf16.xpose.msra.mxu0 0
        %982 = vmatprep.subr.bf16.mxu0 0
        %983 = vmatpush1.bf16.xpose.msra.mxu0 %v966
        %984 = vmatprep.subr.bf16.mxu0 0
        %985 = vmatpush2.bf16.xpose.msra.mxu0 0
        %986 = vmatprep.subr.bf16.mxu0 0
        %987 = vmatpush2.bf16.xpose.msra.mxu0 0
        %988 = vmatprep.subr.bf16.mxu0 0
        %989 = vmatpush2.bf16.xpose.msra.mxu0 0
        %990 = vmatprep.subr.bf16.mxu0 0
        %991 = vmatpush2.bf16.xpose.msra.mxu0 0
        %992 = vmatprep.subr.bf16.mxu0 0
        %993 = vmatpush2.bf16.xpose.msra.mxu0 0
        %994 = vmatprep.subr.bf16.mxu0 0
        %995 = vmatpush2.bf16.xpose.msra.mxu0 0
        %996 = vmatprep.subr.bf16.mxu0 0
        %997 = vmatpush2.bf16.xpose.msra.mxu0 0
        %998 = vmatprep.subr.bf16.mxu0 0
        %999 = vmatpush2.bf16.xpose.msra.mxu0 0
        %1000 = vmatprep.mubr.bf16.mxu0 0
        %1001 = vmatmul.mubr.bf16.gmra.mxu0 %v963
        %v1002 = vpop.f32.mrf.mxu0
        %v1003 = vadd.f32 0.0, %v1002
        %v1004 = vpop.f32.mrf.mxu0
        %v1005 = vpop.f32.mrf.mxu0
        %v1006 = vpop.f32.mrf.mxu0
        %1007 = vdwg.mxu0
        %v1008 = vmul.f32 %v1003, 0.25
        %v1009 = vadd.f32 %v1008, %v888
        %vm1010 = vcmask 64512
        %v1011 = vsel %vm1010, %v1009, -inf
        %1012 = vmax.xlane.f32.xlu0 %v1011
        %v1013 = vpop.xlane.xlu0 %1012
        %v1014 = vsub.f32 %v1009, %v1013
        %v1015 = vmul.f32 %v1014, 1.442695
        %v1016 = vpow.pop %v1015
        %v1017 = vsel %vm1010, %v1016, 0.0
        %1018 = vadd.xlane.f32.xlu0 %v1017
        %v1019 = vpop.xlane.xlu0 %1018
        %v1020 = vrcp.pop %v1019
        %v1021 = vmul.f32 %v1016, %v1020
        %v1022 = vpack.c.bf16 %v1021, %v1021
        %1023 = vrot.lane.b32.xlu0 %v957, 64
        %v1024 = vpop.permute.xlu0 %1023
        %v1026 = vsel %vm1010, %v1022, 0
        %vm1028 = vcmask 1043456
        %v1030 = vsel %vm1028, %v1024, 0
        %1032 = vmatprep.subr.bf16.mxu0 0
        %1033 = vmatpush1.bf16.msra.mxu0 0
        %1034 = vmatprep.subr.bf16.mxu0 0
        %1035 = vmatpush1.bf16.msra.mxu0 0
        %1036 = vmatprep.subr.bf16.mxu0 0
        %1037 = vmatpush1.bf16.msra.mxu0 0
        %1038 = vmatprep.subr.bf16.mxu0 0
        %1039 = vmatpush1.bf16.msra.mxu0 0
        %1040 = vmatprep.subr.bf16.mxu0 0
        %1041 = vmatpush1.bf16.msra.mxu0 0
        %1042 = vmatprep.subr.bf16.mxu0 0
        %1043 = vmatpush1.bf16.msra.mxu0 0
        %1044 = vmatprep.subr.bf16.mxu0 0
        %1045 = vmatpush1.bf16.msra.mxu0 0
        %1046 = vmatprep.subr.bf16.mxu0 0
        %1047 = vmatpush1.bf16.msra.mxu0 %v1030
        %1048 = vmatprep.subr.bf16.mxu0 0
        %1049 = vmatpush2.bf16.msra.mxu0 0
        %1050 = vmatprep.subr.bf16.mxu0 0
        %1051 = vmatpush2.bf16.msra.mxu0 0
        %1052 = vmatprep.subr.bf16.mxu0 0
        %1053 = vmatpush2.bf16.msra.mxu0 0
        %1054 = vmatprep.subr.bf16.mxu0 0
        %1055 = vmatpush2.bf16.msra.mxu0 0
        %1056 = vmatprep.subr.bf16.mxu0 0
        %1057 = vmatpush2.bf16.msra.mxu0 0
        %1058 = vmatprep.subr.bf16.mxu0 0
        %1059 = vmatpush2.bf16.msra.mxu0 0
        %1060 = vmatprep.subr.bf16.mxu0 0
        %1061 = vmatpush2.bf16.msra.mxu0 0
        %1062 = vmatprep.subr.bf16.mxu0 0
        %1063 = vmatpush2.bf16.msra.mxu0 0
        %1064 = vmatprep.mubr.bf16.mxu0 0
        %1065 = vmatmul.mubr.bf16.gmra.mxu0 %v1026
        %v1066 = vpop.f32.mrf.mxu0
        %v1067 = vadd.f32 0.0, %v1066
        %v1068 = vpop.f32.mrf.mxu0
        %v1069 = vpop.f32.mrf.mxu0
        %v1070 = vpop.f32.mrf.mxu0
        %1071 = vdwg.mxu0
        %1072 = vst.msk [vmem:[#allocation3] sm:$0xff] %vm961, %v1067
        %1073 = vrot.lane.b32.xlu0 %v957, 112
        %v1074 = vpop.permute.xlu0 %1073
        %1075 = vrot.lane.b32.xlu0 %v957, 80
        %v1076 = vpop.permute.xlu0 %1075
        %v1078 = vsel %vm961, %v1074, 0
        %v1081 = vsel %vm961, %v1076, 0
        %1083 = vmatprep.subr.bf16.mxu0 0
        %1084 = vmatpush1.bf16.xpose.msra.mxu0 0
        %1085 = vmatprep.subr.bf16.mxu0 0
        %1086 = vmatpush1.bf16.xpose.msra.mxu0 0
        %1087 = vmatprep.subr.bf16.mxu0 0
        %1088 = vmatpush1.bf16.xpose.msra.mxu0 0
        %1089 = vmatprep.subr.bf16.mxu0 0
        %1090 = vmatpush1.bf16.xpose.msra.mxu0 0
        %1091 = vmatprep.subr.bf16.mxu0 0
        %1092 = vmatpush1.bf16.xpose.msra.mxu0 0
        %1093 = vmatprep.subr.bf16.mxu0 0
        %1094 = vmatpush1.bf16.xpose.msra.mxu0 0
        %1095 = vmatprep.subr.bf16.mxu0 0
        %1096 = vmatpush1.bf16.xpose.msra.mxu0 0
        %1097 = vmatprep.subr.bf16.mxu0 0
        %1098 = vmatpush1.bf16.xpose.msra.mxu0 %v1081
        %1099 = vmatprep.subr.bf16.mxu0 0
        %1100 = vmatpush2.bf16.xpose.msra.mxu0 0
        %1101 = vmatprep.subr.bf16.mxu0 0
        %1102 = vmatpush2.bf16.xpose.msra.mxu0 0
        %1103 = vmatprep.subr.bf16.mxu0 0
        %1104 = vmatpush2.bf16.xpose.msra.mxu0 0
        %1105 = vmatprep.subr.bf16.mxu0 0
        %1106 = vmatpush2.bf16.xpose.msra.mxu0 0
        %1107 = vmatprep.subr.bf16.mxu0 0
        %1108 = vmatpush2.bf16.xpose.msra.mxu0 0
        %1109 = vmatprep.subr.bf16.mxu0 0
        %1110 = vmatpush2.bf16.xpose.msra.mxu0 0
        %1111 = vmatprep.subr.bf16.mxu0 0
        %1112 = vmatpush2.bf16.xpose.msra.mxu0 0
        %1113 = vmatprep.subr.bf16.mxu0 0
        %1114 = vmatpush2.bf16.xpose.msra.mxu0 0
        %1115 = vmatprep.mubr.bf16.mxu0 0
        %1116 = vmatmul.mubr.bf16.gmra.mxu0 %v1078
        %v1117 = vpop.f32.mrf.mxu0
        %v1118 = vadd.f32 0.0, %v1117
        %v1119 = vpop.f32.mrf.mxu0
        %v1120 = vpop.f32.mrf.mxu0
        %v1121 = vpop.f32.mrf.mxu0
        %1122 = vdwg.mxu0
        %v1123 = vmul.f32 %v1118, 0.25
        %v1124 = vadd.f32 %v1123, %v888
        %v1125 = vsel %vm1010, %v1124, -inf
        %1126 = vmax.xlane.f32.xlu0 %v1125
        %v1127 = vpop.xlane.xlu0 %1126
        %v1128 = vsub.f32 %v1124, %v1127
        %v1129 = vmul.f32 %v1128, 1.442695
        %v1130 = vpow.pop %v1129
        %v1131 = vsel %vm1010, %v1130, 0.0
        %1132 = vadd.xlane.f32.xlu0 %v1131
        %v1133 = vpop.xlane.xlu0 %1132
        %v1134 = vrcp.pop %v1133
        %v1135 = vmul.f32 %v1130, %v1134
        %v1136 = vpack.c.bf16 %v1135, %v1135
        %1137 = vrot.lane.b32.xlu0 %v957, 48
        %v1138 = vpop.permute.xlu0 %1137
        %v1140 = vsel %vm1010, %v1136, 0
        %v1143 = vsel %vm1028, %v1138, 0
        %1145 = vmatprep.subr.bf16.mxu0 0
        %1146 = vmatpush1.bf16.msra.mxu0 0
        %1147 = vmatprep.subr.bf16.mxu0 0
        %1148 = vmatpush1.bf16.msra.mxu0 0
        %1149 = vmatprep.subr.bf16.mxu0 0
        %1150 = vmatpush1.bf16.msra.mxu0 0
        %1151 = vmatprep.subr.bf16.mxu0 0
        %1152 = vmatpush1.bf16.msra.mxu0 0
        %1153 = vmatprep.subr.bf16.mxu0 0
        %1154 = vmatpush1.bf16.msra.mxu0 0
        %1155 = vmatprep.subr.bf16.mxu0 0
        %1156 = vmatpush1.bf16.msra.mxu0 0
        %1157 = vmatprep.subr.bf16.mxu0 0
        %1158 = vmatpush1.bf16.msra.mxu0 0
        %1159 = vmatprep.subr.bf16.mxu0 0
        %1160 = vmatpush1.bf16.msra.mxu0 %v1143
        %1161 = vmatprep.subr.bf16.mxu0 0
        %1162 = vmatpush2.bf16.msra.mxu0 0
        %1163 = vmatprep.subr.bf16.mxu0 0
        %1164 = vmatpush2.bf16.msra.mxu0 0
        %1165 = vmatprep.subr.bf16.mxu0 0
        %1166 = vmatpush2.bf16.msra.mxu0 0
        %1167 = vmatprep.subr.bf16.mxu0 0
        %1168 = vmatpush2.bf16.msra.mxu0 0
        %1169 = vmatprep.subr.bf16.mxu0 0
        %1170 = vmatpush2.bf16.msra.mxu0 0
        %1171 = vmatprep.subr.bf16.mxu0 0
        %1172 = vmatpush2.bf16.msra.mxu0 0
        %1173 = vmatprep.subr.bf16.mxu0 0
        %1174 = vmatpush2.bf16.msra.mxu0 0
        %1175 = vmatprep.subr.bf16.mxu0 0
        %1176 = vmatpush2.bf16.msra.mxu0 0
        %1177 = vmatprep.mubr.bf16.mxu0 0
        %1178 = vmatmul.mubr.bf16.gmra.mxu0 %v1140
        %v1179 = vpop.f32.mrf.mxu0
        %v1180 = vadd.f32 0.0, %v1179
        %v1181 = vpop.f32.mrf.mxu0
        %v1182 = vpop.f32.mrf.mxu0
        %v1183 = vpop.f32.mrf.mxu0
        %1184 = vdwg.mxu0
        %1186 = vrot.lane.b32.xlu0 %v1180, 16
        %v1187 = vpop.permute.xlu0 %1186
        %vm1189 = vcmask 261248
        %1190 = vst.msk [vmem:[#allocation3] sm:$0xff] %vm1189, %v1187
        %v1191 = vld [vmem:[#allocation3] sm:$0xff]
        %v1192 = vpack.c.bf16 %v1191, %v1191
        %v1193 = vld [vmem:[%s760] sm:$0xf]
        %v1194 = vld [vmem:[%s760 + $0x4] sm:$0xf]
        %v1195 = vld [vmem:[%s760 + $0x8] sm:$0xf]
        %v1196 = vld [vmem:[%s760 + $0xc] sm:$0xf]
        %v1197 = vld [vmem:[%s763] sm:$0x1]
        %v1199 = vlaneseq
        %v1200 = vshrl.u32 %v1199, 7
        %v1201 = vsub.s32 0, %v1200
        %v1202 = vrot.slane %v1197, %v1201
        %v1208 = vunpack.c.l.b16 %v1193
        %v1209 = vunpack.c.l.b16 %v1194
        %v1210 = vunpack.c.l.b16 %v1195
        %v1211 = vunpack.c.l.b16 %v1196
        %v1212 = vpack.c.b16 %v1209, %v1208
        %v1213 = vpack.c.b16 %v1211, %v1210
        %v1217 = vsel %vm913, %v1192, 0
        %1219 = vmatprep.subr.bf16.mxu0 0
        %1220 = vmatpush1.bf16.msra.mxu0 0
        %1221 = vmatprep.subr.bf16.mxu0 0
        %1222 = vmatpush1.bf16.msra.mxu0 0
        %1223 = vmatprep.subr.bf16.mxu0 0
        %1224 = vmatpush1.bf16.msra.mxu0 0
        %1225 = vmatprep.subr.bf16.mxu0 0
        %1226 = vmatpush1.bf16.msra.mxu0 0
        %1227 = vmatprep.subr.bf16.mxu0 0
        %1228 = vmatpush1.bf16.msra.mxu0 0
        %1229 = vmatprep.subr.bf16.mxu0 0
        %1230 = vmatpush1.bf16.msra.mxu0 0
        %1231 = vmatprep.subr.bf16.mxu0 0
        %1232 = vmatpush1.bf16.msra.mxu0 %v1213
        %1233 = vmatprep.subr.bf16.mxu0 0
        %1234 = vmatpush1.bf16.msra.mxu0 %v1212
        %1235 = vmatprep.subr.bf16.mxu0 0
        %1236 = vmatpush2.bf16.msra.mxu0 0
        %1237 = vmatprep.subr.bf16.mxu0 0
        %1238 = vmatpush2.bf16.msra.mxu0 0
        %1239 = vmatprep.subr.bf16.mxu0 0
        %1240 = vmatpush2.bf16.msra.mxu0 0
        %1241 = vmatprep.subr.bf16.mxu0 0
        %1242 = vmatpush2.bf16.msra.mxu0 0
        %1243 = vmatprep.subr.bf16.mxu0 0
        %1244 = vmatpush2.bf16.msra.mxu0 0
        %1245 = vmatprep.subr.bf16.mxu0 0
        %1246 = vmatpush2.bf16.msra.mxu0 0
        %1247 = vmatprep.subr.bf16.mxu0 0
        %1248 = vmatpush2.bf16.msra.mxu0 0
        %1249 = vmatprep.subr.bf16.mxu0 0
        %1250 = vmatpush2.bf16.msra.mxu0 0
        %1251 = vmatprep.mubr.bf16.mxu0 0
        %1252 = vmatmul.mubr.bf16.gmra.mxu0 %v1217
        %v1253 = vpop.f32.mrf.mxu0
        %v1254 = vadd.f32 %v1202, %v1253
        %v1255 = vpop.f32.mrf.mxu0
        %v1256 = vpop.f32.mrf.mxu0
        %v1257 = vpop.f32.mrf.mxu0
        %1258 = vdwg.mxu0
        %v1259 = vadd.f32 %v830, %v1254
        %v1260 = vld [vmem:[%s766] sm:$0x1]
        %v1261 = vld [vmem:[%s769] sm:$0x1]
        %v1262 = vsel %vm913, %v1259, 0.0
        %1263 = vadd.xlane.f32.xlu0 %v1262
        %v1264 = vpop.xlane.xlu0 %1263
        %v1265 = vrcp.pop 32.0
        %v1266 = vmul.f32 %v1264, %v1265
        %v1267 = vsub.f32 %v1259, %v1266
        %v1268 = vmul.f32 %v1267, %v1267
        %v1269 = vsel %vm913, %v1268, 0.0
        %1270 = vadd.xlane.f32.xlu0 %v1269
        %v1271 = vpop.xlane.xlu0 %1270
        %v1272 = vmul.f32 %v1271, %v1265
        %v1273 = vadd.f32 %v1272, 1e-12
        %v1274 = vrsqrt.pop %v1273
        %v1275 = vmul.f32 %v1267, %v1274
        %v1277 = vlaneseq
        %v1278 = vshrl.u32 %v1277, 7
        %v1279 = vsub.s32 0, %v1278
        %v1280 = vrot.slane %v1260, %v1279
        %v1282 = vmul.f32 %v1275, %v1280
        %v1284 = vlaneseq
        %v1285 = vshrl.u32 %v1284, 7
        %v1286 = vsub.s32 0, %v1285
        %v1287 = vrot.slane %v1261, %v1286
        %v1289 = vadd.f32 %v1282, %v1287
        %v1290 = vpack.c.bf16 %v1289, %v1289
        %v1291 = vld [vmem:[%s774] sm:$0xf]
        %v1292 = vld [vmem:[%s774 + $0x4] sm:$0xf]
        %v1293 = vld [vmem:[%s774 + $0x8] sm:$0xf]
        %v1294 = vld [vmem:[%s774 + $0xc] sm:$0xf]
        %v1295 = vld [vmem:[%s777] sm:$0x1]
        %v1297 = vlaneseq
        %v1298 = vshrl.u32 %v1297, 7
        %v1299 = vsub.s32 0, %v1298
        %v1300 = vrot.slane %v1295, %v1299
        %v1306 = vunpack.c.l.b16 %v1291
        %v1307 = vunpack.c.l.b16 %v1292
        %v1308 = vunpack.c.l.b16 %v1293
        %v1309 = vunpack.c.l.b16 %v1294
        %v1310 = vpack.c.b16 %v1307, %v1306
        %v1311 = vpack.c.b16 %v1309, %v1308
        %v1315 = vsel %vm913, %v1290, 0
        %1317 = vmatprep.subr.bf16.mxu0 0
        %1318 = vmatpush1.bf16.msra.mxu0 0
        %1319 = vmatprep.subr.bf16.mxu0 0
        %1320 = vmatpush1.bf16.msra.mxu0 0
        %1321 = vmatprep.subr.bf16.mxu0 0
        %1322 = vmatpush1.bf16.msra.mxu0 0
        %1323 = vmatprep.subr.bf16.mxu0 0
        %1324 = vmatpush1.bf16.msra.mxu0 0
        %1325 = vmatprep.subr.bf16.mxu0 0
        %1326 = vmatpush1.bf16.msra.mxu0 0
        %1327 = vmatprep.subr.bf16.mxu0 0
        %1328 = vmatpush1.bf16.msra.mxu0 0
        %1329 = vmatprep.subr.bf16.mxu0 0
        %1330 = vmatpush1.bf16.msra.mxu0 %v1311
        %1331 = vmatprep.subr.bf16.mxu0 0
        %1332 = vmatpush1.bf16.msra.mxu0 %v1310
        %1333 = vmatprep.subr.bf16.mxu0 0
        %1334 = vmatpush2.bf16.msra.mxu0 0
        %1335 = vmatprep.subr.bf16.mxu0 0
        %1336 = vmatpush2.bf16.msra.mxu0 0
        %1337 = vmatprep.subr.bf16.mxu0 0
        %1338 = vmatpush2.bf16.msra.mxu0 0
        %1339 = vmatprep.subr.bf16.mxu0 0
        %1340 = vmatpush2.bf16.msra.mxu0 0
        %1341 = vmatprep.subr.bf16.mxu0 0
        %1342 = vmatpush2.bf16.msra.mxu0 0
        %1343 = vmatprep.subr.bf16.mxu0 0
        %1344 = vmatpush2.bf16.msra.mxu0 0
        %1345 = vmatprep.subr.bf16.mxu0 0
        %1346 = vmatpush2.bf16.msra.mxu0 0
        %1347 = vmatprep.subr.bf16.mxu0 0
        %1348 = vmatpush2.bf16.msra.mxu0 0
        %1349 = vmatprep.mubr.bf16.mxu0 0
        %1350 = vmatmul.mubr.bf16.gmra.mxu0 %v1315
        %v1351 = vpop.f32.mrf.mxu0
        %v1352 = vadd.f32 %v1300, %v1351
        %v1353 = vpop.f32.mrf.mxu0
        %v1354 = vpop.f32.mrf.mxu0
        %v1355 = vpop.f32.mrf.mxu0
        %1356 = vdwg.mxu0
        %v1357 = vmul.f32 %v1352, 0.5
        %v1358 = vmul.f32 %v1352, 0.044715
        %v1359 = vmul.f32 %v1358, %v1352
        %v1360 = vmul.f32 %v1359, %v1352
        %v1361 = vadd.f32 %v1352, %v1360
        %v1362 = vmul.f32 %v1361, 0.7978846
        %v1363 = vtanh.pop %v1362
        %v1364 = vadd.f32 %v1363, 1.0
        %v1365 = vmul.f32 %v1357, %v1364
        %v1366 = vpack.c.bf16 %v1365, %v1365
        %v1367 = vld [vmem:[%s782] sm:$0xf]
        %v1368 = vld [vmem:[%s782 + $0x4] sm:$0xf]
        %v1369 = vld [vmem:[%s782 + $0x8] sm:$0xf]
        %v1370 = vld [vmem:[%s782 + $0xc] sm:$0xf]
        %v1371 = vld [vmem:[%s782 + $0x10] sm:$0xf]
        %v1372 = vld [vmem:[%s782 + $0x14] sm:$0xf]
        %v1373 = vld [vmem:[%s782 + $0x18] sm:$0xf]
        %v1374 = vld [vmem:[%s782 + $0x1c] sm:$0xf]
        %v1375 = vld [vmem:[%s785] sm:$0x1]
        %v1377 = vlaneseq
        %v1378 = vshrl.u32 %v1377, 7
        %v1379 = vsub.s32 0, %v1378
        %v1380 = vrot.slane %v1375, %v1379
        %v1390 = vunpack.c.l.b16 %v1367
        %v1391 = vunpack.c.l.b16 %v1368
        %v1392 = vunpack.c.l.b16 %v1369
        %v1393 = vunpack.c.l.b16 %v1370
        %v1394 = vunpack.c.l.b16 %v1371
        %v1395 = vunpack.c.l.b16 %v1372
        %v1396 = vunpack.c.l.b16 %v1373
        %v1397 = vunpack.c.l.b16 %v1374
        %v1398 = vpack.c.b16 %v1391, %v1390
        %v1399 = vpack.c.b16 %v1393, %v1392
        %v1400 = vpack.c.b16 %v1395, %v1394
        %v1401 = vpack.c.b16 %v1397, %v1396
        %vm1406 = vcmask 523264
        %v1408 = vsel %vm1406, %v1366, 0
        %1410 = vmatprep.subr.bf16.mxu0 0
        %1411 = vmatpush1.bf16.msra.mxu0 0
        %1412 = vmatprep.subr.bf16.mxu0 0
        %1413 = vmatpush1.bf16.msra.mxu0 0
        %1414 = vmatprep.subr.bf16.mxu0 0
        %1415 = vmatpush1.bf16.msra.mxu0 0
        %1416 = vmatprep.subr.bf16.mxu0 0
        %1417 = vmatpush1.bf16.msra.mxu0 0
        %1418 = vmatprep.subr.bf16.mxu0 0
        %1419 = vmatpush1.bf16.msra.mxu0 %v1401
        %1420 = vmatprep.subr.bf16.mxu0 0
        %1421 = vmatpush1.bf16.msra.mxu0 %v1400
        %1422 = vmatprep.subr.bf16.mxu0 0
        %1423 = vmatpush1.bf16.msra.mxu0 %v1399
        %1424 = vmatprep.subr.bf16.mxu0 0
        %1425 = vmatpush1.bf16.msra.mxu0 %v1398
        %1426 = vmatprep.subr.bf16.mxu0 0
        %1427 = vmatpush2.bf16.msra.mxu0 0
        %1428 = vmatprep.subr.bf16.mxu0 0
        %1429 = vmatpush2.bf16.msra.mxu0 0
        %1430 = vmatprep.subr.bf16.mxu0 0
        %1431 = vmatpush2.bf16.msra.mxu0 0
        %1432 = vmatprep.subr.bf16.mxu0 0
        %1433 = vmatpush2.bf16.msra.mxu0 0
        %1434 = vmatprep.subr.bf16.mxu0 0
        %1435 = vmatpush2.bf16.msra.mxu0 0
        %1436 = vmatprep.subr.bf16.mxu0 0
        %1437 = vmatpush2.bf16.msra.mxu0 0
        %1438 = vmatprep.subr.bf16.mxu0 0
        %1439 = vmatpush2.bf16.msra.mxu0 0
        %1440 = vmatprep.subr.bf16.mxu0 0
        %1441 = vmatpush2.bf16.msra.mxu0 0
        %1442 = vmatprep.mubr.bf16.mxu0 0
        %1443 = vmatmul.mubr.bf16.gmra.mxu0 %v1408
        %v1444 = vpop.f32.mrf.mxu0
        %v1445 = vadd.f32 %v1380, %v1444
        %v1446 = vpop.f32.mrf.mxu0
        %v1447 = vpop.f32.mrf.mxu0
        %v1448 = vpop.f32.mrf.mxu0
        %1449 = vdwg.mxu0
        %v1450 = vadd.f32 %v1289, %v1445
        %v1451 = vld [vmem:[%s788] sm:$0x1]
        %v1452 = vld [vmem:[%s791] sm:$0x1]
        %v1453 = vsel %vm913, %v1450, 0.0
        %1454 = vadd.xlane.f32.xlu0 %v1453
        %v1455 = vpop.xlane.xlu0 %1454
        %v1456 = vmul.f32 %v1455, %v1265
        %v1457 = vsub.f32 %v1450, %v1456
        %v1458 = vmul.f32 %v1457, %v1457
        %v1459 = vsel %vm913, %v1458, 0.0
        %1460 = vadd.xlane.f32.xlu0 %v1459
        %v1461 = vpop.xlane.xlu0 %1460
        %v1462 = vmul.f32 %v1461, %v1265
        %v1463 = vadd.f32 %v1462, 1e-12
        %v1464 = vrsqrt.pop %v1463
        %v1465 = vmul.f32 %v1457, %v1464
        %v1467 = vlaneseq
        %v1468 = vshrl.u32 %v1467, 7
        %v1469 = vsub.s32 0, %v1468
        %v1470 = vrot.slane %v1451, %v1469
        %v1472 = vmul.f32 %v1465, %v1470
        %v1474 = vlaneseq
        %v1475 = vshrl.u32 %v1474, 7
        %v1476 = vsub.s32 0, %v1475
        %v1477 = vrot.slane %v1452, %v1476
        %v1479 = vadd.f32 %v1472, %v1477
        %1480 = vst.msk [vmem:[#allocation2] sm:$0xff] %vm913, %v1479
        %p1481 = scmp.eq.s32.totalorder %s48, 1
        // Predicated region
        $region93: #{bert_forward.1} parent=87 // pred_check
          %p1482 = pneg %p1481
        $region94: #{bert_forward.1} parent=87 // pred_check_branch
          %1484 = sbr.rel (%p1482) target = $region96
        $region95: #{bert_forward.1} parent=87 // pred_region
          %1485 = vst.msk [vmem:[%s737] sm:$0xff] %vm913, %v1479
          %v1486 = vpack.c.bf16 %v1479, %v1479
          %v1487 = vld [vmem:[%s16] sm:$0xf]
          %v1488 = vld [vmem:[%s16 + $0x4] sm:$0xf]
          %v1489 = vld [vmem:[%s16 + $0x8] sm:$0xf]
          %v1490 = vld [vmem:[%s16 + $0xc] sm:$0xf]
          %v1491 = vld [vmem:[%s17] sm:$0x1]
          %v1496 = vunpack.c.l.b16 %v1487
          %v1497 = vunpack.c.l.b16 %v1488
          %v1498 = vunpack.c.l.b16 %v1489
          %v1499 = vunpack.c.l.b16 %v1490
          %v1500 = vpack.c.b16 %v1497, %v1496
          %v1501 = vpack.c.b16 %v1499, %v1498
          %v1505 = vsel %vm913, %v1486, 0
          %1507 = vmatprep.subr.bf16.mxu0 0
          %1508 = vmatpush1.bf16.msra.mxu0 0
          %1509 = vmatprep.subr.bf16.mxu0 0
          %1510 = vmatpush1.bf16.msra.mxu0 0
          %1511 = vmatprep.subr.bf16.mxu0 0
          %1512 = vmatpush1.bf16.msra.mxu0 0
          %1513 = vmatprep.subr.bf16.mxu0 0
          %1514 = vmatpush1.bf16.msra.mxu0 0
          %1515 = vmatprep.subr.bf16.mxu0 0
          %1516 = vmatpush1.bf16.msra.mxu0 0
          %1517 = vmatprep.subr.bf16.mxu0 0
          %1518 = vmatpush1.bf16.msra.mxu0 0
          %1519 = vmatprep.subr.bf16.mxu0 0
          %1520 = vmatpush1.bf16.msra.mxu0 %v1501
          %1521 = vmatprep.subr.bf16.mxu0 0
          %1522 = vmatpush1.bf16.msra.mxu0 %v1500
          %1523 = vmatprep.subr.bf16.mxu0 0
          %1524 = vmatpush2.bf16.msra.mxu0 0
          %1525 = vmatprep.subr.bf16.mxu0 0
          %1526 = vmatpush2.bf16.msra.mxu0 0
          %1527 = vmatprep.subr.bf16.mxu0 0
          %1528 = vmatpush2.bf16.msra.mxu0 0
          %1529 = vmatprep.subr.bf16.mxu0 0
          %1530 = vmatpush2.bf16.msra.mxu0 0
          %1531 = vmatprep.subr.bf16.mxu0 0
          %1532 = vmatpush2.bf16.msra.mxu0 0
          %1533 = vmatprep.subr.bf16.mxu0 0
          %1534 = vmatpush2.bf16.msra.mxu0 0
          %1535 = vmatprep.subr.bf16.mxu0 0
          %1536 = vmatpush2.bf16.msra.mxu0 0
          %1537 = vmatprep.subr.bf16.mxu0 0
          %1538 = vmatpush2.bf16.msra.mxu0 0
          %1539 = vmatprep.mubr.bf16.mxu0 0
          %1540 = vmatmul.mubr.bf16.gmra.mxu0 %v1505
          %v1541 = vpop.f32.mrf.mxu0
          %v1542 = vadd.f32 %v1491, %v1541
          %v1543 = vpop.f32.mrf.mxu0
          %v1544 = vpop.f32.mrf.mxu0
          %v1545 = vpop.f32.mrf.mxu0
          %1546 = vdwg.mxu0
          %v1547 = vtanh.pop %v1542
          %vm1548 = vcmask 253952
          %1549 = vst.msk [vmem:[%s743] sm:$0x1] %vm1548, %v1547
        $region96: #{bert_forward.1} parent=87 // pred_fallthru
          _
        %s1550 = sand.u32 %s485, 1
        %s1551 = scalar_lea.sflag [#allocation7], %s1550
        %s1552 = sand.u32 %s485, 1
        %s1553 = smul.addr %s1552, 8
        %s1554 = scalar_lea.vmem [#allocation6], %s1553
        %s1555 = sand.u32 %s511, 1
        %s1556 = scalar_lea.sflag [#allocation9], %s1555
        %s1557 = sand.u32 %s511, 1
        %s1558 = scalar_lea.vmem [#allocation8], %s1557
        // Predicated region
        $region97: #{bert_forward.1} parent=87 // pred_check
          %p1559 = pneg %p495
        $region98: #{bert_forward.1} parent=87 // pred_check_branch
          %1561 = sbr.rel (%p1559) target = $region100
        $region99: #{bert_forward.1} parent=87 // pred_region
          %s1563 = ssub.s32 128, 128
          %1564 = vsyncadd %s1551, %s1563
          %s1565 = smul.addr %s47, 128
          %s1566 = scalar_lea.hbm %s18, %s1565
          %s1568 = sshll.u32 %s1554, 4
          %s1569 = int_to_ptr.vmem [resolvable:$true] %s1568
          %1571 = dma.vmem_to_hbm [thread:$0]  %s1569, 128, %s1566, %s1551
        $region100: #{bert_forward.1} parent=87 // pred_fallthru
          _
        // Predicated region
        $region101: #{bert_forward.1} parent=87 // pred_check
          %p1572 = pneg %p521
        $region102: #{bert_forward.1} parent=87 // pred_check_branch
          %1574 = sbr.rel (%p1572) target = $region104
        $region103: #{bert_forward.1} parent=87 // pred_region
          %s1576 = ssub.s32 16, 16
          %1577 = vsyncadd %s1556, %s1576
          %s1578 = smul.addr %s47, 16
          %s1579 = scalar_lea.hbm %s19, %s1578
          %s1581 = sshll.u32 %s1558, 4
          %s1582 = int_to_ptr.vmem [resolvable:$true] %s1581
          %1584 = dma.vmem_to_hbm [thread:$0]  %s1582, 16, %s1579, %s1556
        $region104: #{bert_forward.1} parent=87 // pred_fallthru
          _
      $region88: #{bert_forward.1} parent=5 // pred_fallthru
        _
      %p1585 = scmp.le.s32.totalorder 2, %s38
      // Predicated region
      $region105: #{bert_forward.1} parent=5 // pred_check
        %p1586 = pneg %p1585
      $region106: #{bert_forward.1} parent=5 // pred_check_branch
        %1588 = sbr.rel (%p1586) target = $region108
      $region107: #{bert_forward.1} parent=5 // pred_region
        %s1589 = ssub.s32 %s38, 2
        // Predicated region
        $region109: #{bert_forward.1} parent=107 // pred_check
          %p1590 = pneg %p501
        $region110: #{bert_forward.1} parent=107 // pred_check_branch
          %1592 = sbr.rel (%p1590) target = $region112
        $region111: #{bert_forward.1} parent=107 // pred_region
          %s1593 = sand.u32 %s486, 1
          %s1594 = scalar_lea.sflag [#allocation7], %s1593
          %s1595 = sand.u32 %s486, 1
          %s1596 = smul.addr %s1595, 8
          %s1597 = scalar_lea.vmem [#allocation6], %s1596
          %1598 = dma.done %s1594, 128
        $region112: #{bert_forward.1} parent=107 // pred_fallthru
          _
        // Predicated region
        $region113: #{bert_forward.1} parent=107 // pred_check
          %p1599 = pneg %p527
        $region114: #{bert_forward.1} parent=107 // pred_check_branch
          %1601 = sbr.rel (%p1599) target = $region116
        $region115: #{bert_forward.1} parent=107 // pred_region
          %s1602 = sand.u32 %s512, 1
          %s1603 = scalar_lea.sflag [#allocation9], %s1602
          %s1604 = sand.u32 %s512, 1
          %s1605 = scalar_lea.vmem [#allocation8], %s1604
          %1606 = dma.done %s1603, 16
        $region116: #{bert_forward.1} parent=107 // pred_fallthru
          _
      $region108: #{bert_forward.1} parent=5 // pred_fallthru
        _
    $region6: #{bert_forward.1} parent=1 // loop_footer
      %s42 = sadd.s32 1, %s38
    $region7: #{bert_forward.1} parent=1 // loop_footer_branch
      %37 = sbr.rel target = $region3
    $region8: #{bert_forward.1} parent=1 // loop_exit
      _
    %1607 = vsyncpa [#allocation7], 1
    %s1608 = scalar_lea.sflag [#allocation7], 1
    %1609 = vsyncpa %s1608, 1
    %1610 = vsyncpa [#allocation9], 1
    %s1611 = scalar_lea.sflag [#allocation9], 1
    %1612 = vsyncpa %s1611, 1

</llo_original>
